<compile_context>
chip_gen: v6e
topology: v6e:2x2x1
jax: 0.10.0
libtpu: 0.0.40
codegen_flags: <defaults>
</compile_context>

<pallas_src>
import numpy as np
import jax
import jax.numpy as jnp
from jax.experimental import pallas as pl
from jax.experimental.pallas import tpu as pltpu

EPS = 1e-5


def _conv_block_kernel(x_ref, mask_ref, w1b_ref, w2b_ref, bn_ref, r_ref, b_ref, o_ref):
    """All operands VMEM-resident (tiny shapes for this block).

    x_ref    : (NH, W*Cin)          channel-packed input rows, f32
    mask_ref : (NH, 2)              [mask for y-1 tap, mask for y+1 tap] (0 at image edges)
    w1b_ref  : (3, W*Cin,  W*Cout)  banded conv1 weights per kh, bf16
    w2b_ref  : (3, W*Cout, W*Cout)  banded conv2 weights per kh, bf16
    bn_ref   : (4, Cout)            [gamma1, beta1, gamma2, beta2]
    r_ref    : (W*Cout, Cout)       per-channel reduce matrix, 1/(N*H*W) folded in
    b_ref    : (Cout, W*Cout)       per-channel broadcast-back matrix
    o_ref    : (NH, W*Cout)         lane-dense f32 output slab
    """
    nh = x_ref.shape[0]
    r_mat = r_ref[...]
    b_mat = b_ref[...]
    mask_m = mask_ref[:, 0:1]          # (NH, 1): zero where row is first row of its image
    mask_p = mask_ref[:, 1:2]          # (NH, 1): zero where row is last row of its image

    def conv3x3(a, wb_ref):
        # Vertical taps via XLU rolls + edge mask (f32), cast to bf16 at the MXU input.
        up = pltpu.roll(a, shift=1, axis=0) * mask_m          # row y-1
        dn = pltpu.roll(a, shift=nh - 1, axis=0) * mask_p     # row y+1
        y = jnp.dot(up.astype(jnp.bfloat16), wb_ref[0],
                    preferred_element_type=jnp.float32)
        y += jnp.dot(a.astype(jnp.bfloat16), wb_ref[1],
                     preferred_element_type=jnp.float32)
        y += jnp.dot(dn.astype(jnp.bfloat16), wb_ref[2],
                     preferred_element_type=jnp.float32)
        return y                                              # (NH, W*Cout) f32

    def bn_relu(y, gamma, beta):
        # Centered two-pass batch stats, all in f32.  Reductions over rows are XLU;
        # the packed-width reduce / broadcast are tiny M=1..2 MXU drains.
        mean_c = jnp.dot(jnp.sum(y, axis=0, keepdims=True), r_mat,
                         preferred_element_type=jnp.float32)          # (1, Cout)
        mean_t = jnp.dot(mean_c, b_mat,
                         preferred_element_type=jnp.float32)          # (1, W*Cout)
        yc = y - mean_t
        var_c = jnp.dot(jnp.sum(yc * yc, axis=0, keepdims=True), r_mat,
                        preferred_element_type=jnp.float32)           # (1, Cout)
        scale_c = jax.lax.rsqrt(var_c + EPS) * gamma                  # EUP rsqrt
        sb = jnp.dot(jnp.concatenate([scale_c, beta], axis=0), b_mat,
                     preferred_element_type=jnp.float32)              # (2, W*Cout)
        return jnp.maximum(yc * sb[0:1, :] + sb[1:2, :], 0.0)

    a1 = bn_relu(conv3x3(x_ref[...], w1b_ref), bn_ref[0:1, :], bn_ref[1:2, :])
    o_ref[...] = bn_relu(conv3x3(a1, w2b_ref), bn_ref[2:3, :], bn_ref[3:4, :])


def _band_weights(w, width):
    """PyTorch (Cout, Cin, 3, 3) conv weight -> (3, W*Cin, W*Cout) per-kh banded GEMMs."""
    c_out, c_in, kh, kw = w.shape
    wt = jnp.transpose(w, (2, 3, 1, 0)).astype(jnp.float32)             # (kh, kw, Cin, Cout)
    xi = np.arange(width)[:, None]
    xo = np.arange(width)[None, :]
    sel = np.stack([(xi == xo + k - 1).astype(np.float32) for k in range(kw)], axis=0)
    b5 = jnp.einsum('kio,hkcd->hicod', sel, wt)                          # (kh, Wi, Cin, Wo, Cout)
    return b5.reshape(kh, width * c_in, width * c_out)


@jax.jit
def conv_block_encoder(x_nchw, w1, b1, g1, be1, w2, b2, g2, be2):
    """x_nchw: (N, Cin, H, W); weights in PyTorch layout (Cout, Cin, 3, 3).

    b1/b2 are accepted for API parity with nn.Conv2d but are analytically cancelled by
    the training-mode BatchNorm mean subtraction, so they never enter the kernel.
    (If this block is ever run with eval-mode running statistics, reinstate them.)
    """
    del b1, b2
    N, Cin, H, W = x_nchw.shape
    Cout = w1.shape[0]
    NH, L2 = N * H, W * Cout

    # Layout plumbing (no FLOPs): channel-packed rows; dy taps are built in-kernel.
    xr = jnp.transpose(x_nchw, (0, 2, 3, 1)).astype(jnp.float32).reshape(NH, W * Cin)

    # Banded per-kh weights, bf16 at the MXU input.
    w1b = _band_weights(w1, W).astype(jnp.bfloat16)                      # (3, W*Cin,  W*Cout)
    w2b = _band_weights(w2, W).astype(jnp.bfloat16)                      # (3, W*Cout, W*Cout)

    # Image-boundary masks for the rolled dy taps.
    row = np.arange(NH)
    mask = np.stack([(row % H != 0), (row % H != H - 1)], axis=1).astype(np.float32)

    # Factored per-channel reduce / broadcast matrices; 1/(N*H*W) folded into R.
    eye = np.eye(Cout, dtype=np.float32)
    r_mat = np.kron(np.ones((W, 1), np.float32), eye) * np.float32(1.0 / (N * H * W))
    b_mat = np.kron(np.ones((1, W), np.float32), eye)

    bn = jnp.stack([g1, be1, g2, be2], axis=0).astype(jnp.float32)       # (4, Cout)

    vmem = pl.BlockSpec(memory_space=pltpu.MemorySpace.VMEM)
    out = pl.pallas_call(
        _conv_block_kernel,
        out_shape=jax.ShapeDtypeStruct((NH, L2), jnp.float32),
        in_specs=[vmem] * 7,
        out_specs=vmem,
        compiler_params=pltpu.CompilerParams(vmem_limit_bytes=32 * 1024 * 1024),
    )(xr, jnp.asarray(mask), w1b, w2b, bn, jnp.asarray(r_mat), jnp.asarray(b_mat))

    # TODO(synk): emit NHWC / fold this transpose into the consumer's layout if allowed;
    # it is a separate XLA op with an extra HBM round trip at scale.
    return jnp.transpose(out.reshape(N, H, W, Cout), (0, 3, 1, 2))       # back to NCHW


def _reference(x, w1, b1, g1, be1, w2, b2, g2, be2):
    """Pure-JAX reference matching PyTorch forward (training-mode BN, conv bias kept)."""
    def conv(x, w, b):
        y = jax.lax.conv_general_dilated(
            x, w, window_strides=(1, 1), padding="SAME",
            dimension_numbers=("NCHW", "OIHW", "NCHW"))
        return y + b[None, :, None, None]

    def bn_relu(y, g, be):
        mean = y.mean(axis=(0, 2, 3), keepdims=True)
        var = ((y - mean) ** 2).mean(axis=(0, 2, 3), keepdims=True)
        yn = (y - mean) / jnp.sqrt(var + EPS)
        return jnp.maximum(yn * g[None, :, None, None] + be[None, :, None, None], 0.0)

    a1 = bn_relu(conv(x, w1, b1), g1, be1)
    return bn_relu(conv(a1, w2, b2), g2, be2)


if __name__ == "__main__":
    N, Cin, Cout, H, W = 2, 4, 8, 16, 16

    key = jax.random.PRNGKey(0)
    ks = jax.random.split(key, 9)
    fan1 = Cin * 9
    fan2 = Cout * 9
    x = jax.random.normal(ks[0], (N, Cin, H, W), jnp.float32)
    w1 = jax.random.uniform(ks[1], (Cout, Cin, 3, 3), jnp.float32,
                            -1.0 / fan1 ** 0.5, 1.0 / fan1 ** 0.5)
    b1 = jax.random.uniform(ks[2], (Cout,), jnp.float32,
                            -1.0 / fan1 ** 0.5, 1.0 / fan1 ** 0.5)
    w2 = jax.random.uniform(ks[3], (Cout, Cout, 3, 3), jnp.float32,
                            -1.0 / fan2 ** 0.5, 1.0 / fan2 ** 0.5)
    b2 = jax.random.uniform(ks[4], (Cout,), jnp.float32,
                            -1.0 / fan2 ** 0.5, 1.0 / fan2 ** 0.5)
    g1 = 1.0 + 0.1 * jax.random.normal(ks[5], (Cout,), jnp.float32)
    be1 = 0.1 * jax.random.normal(ks[6], (Cout,), jnp.float32)
    g2 = 1.0 + 0.1 * jax.random.normal(ks[7], (Cout,), jnp.float32)
    be2 = 0.1 * jax.random.normal(ks[8], (Cout,), jnp.float32)

    out = conv_block_encoder(x, w1, b1, g1, be1, w2, b2, g2, be2)
    out = jax.block_until_ready(out)

    ref = _reference(x, w1, b1, g1, be1, w2, b2, g2, be2)
    assert out.shape == (N, Cout, H, W), out.shape
    # bf16 MXU inputs -> slightly looser tolerance than the pure-f32 variant.
    err = float(jnp.max(jnp.abs(out - ref)))
    assert jnp.allclose(out, ref, atol=2e-2, rtol=2e-2), err

    print("KERNEL_OK")
</pallas_src>

<mosaic_0001>
module attributes {stable_mosaic.version = 11 : i64} {
  func.func @_conv_block_kernel(%arg0: memref<32x64xf32, #tpu.memory_space<vmem>>, %arg1: memref<32x2xf32, #tpu.memory_space<vmem>>, %arg2: memref<3x64x128xbf16, #tpu.memory_space<vmem>>, %arg3: memref<3x128x128xbf16, #tpu.memory_space<vmem>>, %arg4: memref<4x8xf32, #tpu.memory_space<vmem>>, %arg5: memref<128x8xf32, #tpu.memory_space<vmem>>, %arg6: memref<8x128xf32, #tpu.memory_space<vmem>>, %arg7: memref<32x128xf32, #tpu.memory_space<vmem>>) attributes {dimension_semantics = [], scalar_prefetch = 0 : i64, scratch_operands = 0 : i64, tpu.core_type = #tpu.core_type<tc>} {
    %c0 = arith.constant 0 : index
    %c0_0 = arith.constant 0 : index
    %0 = vector.load %arg5[%c0, %c0_0] : memref<128x8xf32, #tpu.memory_space<vmem>>, vector<128x8xf32>
    %c0_1 = arith.constant 0 : index
    %c0_2 = arith.constant 0 : index
    %1 = vector.load %arg6[%c0_1, %c0_2] : memref<8x128xf32, #tpu.memory_space<vmem>>, vector<8x128xf32>
    %c0_3 = arith.constant 0 : index
    %c0_4 = arith.constant 0 : index
    %2 = vector.load %arg1[%c0_3, %c0_4] : memref<32x2xf32, #tpu.memory_space<vmem>>, vector<32x1xf32>
    %c0_5 = arith.constant 0 : index
    %c1 = arith.constant 1 : index
    %3 = vector.load %arg1[%c0_5, %c1] : memref<32x2xf32, #tpu.memory_space<vmem>>, vector<32x1xf32>
    %c0_6 = arith.constant 0 : index
    %c0_7 = arith.constant 0 : index
    %4 = vector.load %arg0[%c0_6, %c0_7] : memref<32x64xf32, #tpu.memory_space<vmem>>, vector<32x64xf32>
    %c1_i32 = arith.constant 1 : i32
    %5 = tpu.dynamic_rotate %4 by %c1_i32 dim 0 : vector<32x64xf32>, i32 -> vector<32x64xf32>
    %6 = vector.broadcast %2 : vector<32x1xf32> to vector<32x64xf32>
    %7 = arith.mulf %5, %6 : vector<32x64xf32>
    %c31_i32 = arith.constant 31 : i32
    %8 = tpu.dynamic_rotate %4 by %c31_i32 dim 0 : vector<32x64xf32>, i32 -> vector<32x64xf32>
    %9 = vector.broadcast %3 : vector<32x1xf32> to vector<32x64xf32>
    %10 = arith.mulf %8, %9 : vector<32x64xf32>
    %11 = arith.truncf %7 : vector<32x64xf32> to vector<32x64xbf16>
    %c0_8 = arith.constant 0 : index
    %c0_9 = arith.constant 0 : index
    %c0_10 = arith.constant 0 : index
    %12 = vector.load %arg2[%c0_8, %c0_9, %c0_10] : memref<3x64x128xbf16, #tpu.memory_space<vmem>>, vector<1x64x128xbf16>
    %13 = vector.shape_cast %12 : vector<1x64x128xbf16> to vector<64x128xbf16>
    %cst = arith.constant dense<0.000000e+00> : vector<32x128xf32>
    %14 = tpu.matmul %11, %13, %cst {dimension_numbers = #tpu.dot_dimension_numbers<[1], [0], [0], [1], [0, 0, 1, 1], [], []>} : vector<32x64xbf16>, vector<64x128xbf16>, vector<32x128xf32> -> vector<32x128xf32>
    %15 = arith.truncf %4 : vector<32x64xf32> to vector<32x64xbf16>
    %c1_11 = arith.constant 1 : index
    %c0_12 = arith.constant 0 : index
    %c0_13 = arith.constant 0 : index
    %16 = vector.load %arg2[%c1_11, %c0_12, %c0_13] : memref<3x64x128xbf16, #tpu.memory_space<vmem>>, vector<1x64x128xbf16>
    %17 = vector.shape_cast %16 : vector<1x64x128xbf16> to vector<64x128xbf16>
    %cst_14 = arith.constant dense<0.000000e+00> : vector<32x128xf32>
    %18 = tpu.matmul %15, %17, %cst_14 {dimension_numbers = #tpu.dot_dimension_numbers<[1], [0], [0], [1], [0, 0, 1, 1], [], []>} : vector<32x64xbf16>, vector<64x128xbf16>, vector<32x128xf32> -> vector<32x128xf32>
    %19 = arith.addf %14, %18 : vector<32x128xf32>
    %20 = arith.truncf %10 : vector<32x64xf32> to vector<32x64xbf16>
    %c2 = arith.constant 2 : index
    %c0_15 = arith.constant 0 : index
    %c0_16 = arith.constant 0 : index
    %21 = vector.load %arg2[%c2, %c0_15, %c0_16] : memref<3x64x128xbf16, #tpu.memory_space<vmem>>, vector<1x64x128xbf16>
    %22 = vector.shape_cast %21 : vector<1x64x128xbf16> to vector<64x128xbf16>
    %cst_17 = arith.constant dense<0.000000e+00> : vector<32x128xf32>
    %23 = tpu.matmul %20, %22, %cst_17 {dimension_numbers = #tpu.dot_dimension_numbers<[1], [0], [0], [1], [0, 0, 1, 1], [], []>} : vector<32x64xbf16>, vector<64x128xbf16>, vector<32x128xf32> -> vector<32x128xf32>
    %24 = arith.addf %19, %23 : vector<32x128xf32>
    %c0_18 = arith.constant 0 : index
    %c0_19 = arith.constant 0 : index
    %25 = vector.load %arg4[%c0_18, %c0_19] : memref<4x8xf32, #tpu.memory_space<vmem>>, vector<1x8xf32>
    %c1_20 = arith.constant 1 : index
    %c0_21 = arith.constant 0 : index
    %26 = vector.load %arg4[%c1_20, %c0_21] : memref<4x8xf32, #tpu.memory_space<vmem>>, vector<1x8xf32>
    %cst_22 = arith.constant dense<0.000000e+00> : vector<128xf32>
    %27 = vector.multi_reduction <add>, %24, %cst_22 [0] : vector<32x128xf32> to vector<128xf32>
    %28 = vector.shape_cast %27 : vector<128xf32> to vector<1x128xf32>
    %cst_23 = arith.constant dense<0.000000e+00> : vector<1x8xf32>
    %29 = tpu.matmul %28, %0, %cst_23 {dimension_numbers = #tpu.dot_dimension_numbers<[1], [0], [0], [1], [0, 0, 1, 1], [], []>} : vector<1x128xf32>, vector<128x8xf32>, vector<1x8xf32> -> vector<1x8xf32>
    %cst_24 = arith.constant dense<0.000000e+00> : vector<1x128xf32>
    %30 = tpu.matmul %29, %1, %cst_24 {dimension_numbers = #tpu.dot_dimension_numbers<[1], [0], [0], [1], [0, 0, 1, 1], [], []>} : vector<1x8xf32>, vector<8x128xf32>, vector<1x128xf32> -> vector<1x128xf32>
    %31 = vector.broadcast %30 : vector<1x128xf32> to vector<32x128xf32>
    %32 = arith.subf %24, %31 : vector<32x128xf32>
    %33 = arith.mulf %32, %32 : vector<32x128xf32>
    %cst_25 = arith.constant dense<0.000000e+00> : vector<128xf32>
    %34 = vector.multi_reduction <add>, %33, %cst_25 [0] : vector<32x128xf32> to vector<128xf32>
    %35 = vector.shape_cast %34 : vector<128xf32> to vector<1x128xf32>
    %cst_26 = arith.constant dense<0.000000e+00> : vector<1x8xf32>
    %36 = tpu.matmul %35, %0, %cst_26 {dimension_numbers = #tpu.dot_dimension_numbers<[1], [0], [0], [1], [0, 0, 1, 1], [], []>} : vector<1x128xf32>, vector<128x8xf32>, vector<1x8xf32> -> vector<1x8xf32>
    %cst_27 = arith.constant 9.99999974E-6 : f32
    %37 = vector.broadcast %cst_27 : f32 to vector<1x8xf32>
    %38 = arith.addf %36, %37 : vector<1x8xf32>
    %39 = math.rsqrt %38 : vector<1x8xf32>
    %40 = arith.mulf %39, %25 : vector<1x8xf32>
    %41 = tpu.concatenate %40, %26 in 0 : vector<1x8xf32>, vector<1x8xf32> -> vector<2x8xf32>
    %cst_28 = arith.constant dense<0.000000e+00> : vector<2x128xf32>
    %42 = tpu.matmul %41, %1, %cst_28 {dimension_numbers = #tpu.dot_dimension_numbers<[1], [0], [0], [1], [0, 0, 1, 1], [], []>} : vector<2x8xf32>, vector<8x128xf32>, vector<2x128xf32> -> vector<2x128xf32>
    %43 = vector.extract_strided_slice %42 {offsets = [0, 0], sizes = [1, 128], strides = [1, 1]} : vector<2x128xf32> to vector<1x128xf32>
    %44 = vector.broadcast %43 : vector<1x128xf32> to vector<32x128xf32>
    %45 = arith.mulf %32, %44 : vector<32x128xf32>
    %46 = vector.extract_strided_slice %42 {offsets = [1, 0], sizes = [1, 128], strides = [1, 1]} : vector<2x128xf32> to vector<1x128xf32>
    %47 = vector.broadcast %46 : vector<1x128xf32> to vector<32x128xf32>
    %48 = arith.addf %45, %47 : vector<32x128xf32>
    %cst_29 = arith.constant 0.000000e+00 : f32
    %49 = vector.broadcast %cst_29 : f32 to vector<32x128xf32>
    %50 = arith.maximumf %48, %49 : vector<32x128xf32>
    %c1_i32_30 = arith.constant 1 : i32
    %51 = tpu.dynamic_rotate %50 by %c1_i32_30 dim 0 : vector<32x128xf32>, i32 -> vector<32x128xf32>
    %52 = vector.broadcast %2 : vector<32x1xf32> to vector<32x128xf32>
    %53 = arith.mulf %51, %52 : vector<32x128xf32>
    %c31_i32_31 = arith.constant 31 : i32
    %54 = tpu.dynamic_rotate %50 by %c31_i32_31 dim 0 : vector<32x128xf32>, i32 -> vector<32x128xf32>
    %55 = vector.broadcast %3 : vector<32x1xf32> to vector<32x128xf32>
    %56 = arith.mulf %54, %55 : vector<32x128xf32>
    %57 = arith.truncf %53 : vector<32x128xf32> to vector<32x128xbf16>
    %c0_32 = arith.constant 0 : index
    %c0_33 = arith.constant 0 : index
    %c0_34 = arith.constant 0 : index
    %58 = vector.load %arg3[%c0_32, %c0_33, %c0_34] : memref<3x128x128xbf16, #tpu.memory_space<vmem>>, vector<1x128x128xbf16>
    %59 = vector.shape_cast %58 : vector<1x128x128xbf16> to vector<128x128xbf16>
    %cst_35 = arith.constant dense<0.000000e+00> : vector<32x128xf32>
    %60 = tpu.matmul %57, %59, %cst_35 {dimension_numbers = #tpu.dot_dimension_numbers<[1], [0], [0], [1], [0, 0, 1, 1], [], []>} : vector<32x128xbf16>, vector<128x128xbf16>, vector<32x128xf32> -> vector<32x128xf32>
    %61 = arith.truncf %50 : vector<32x128xf32> to vector<32x128xbf16>
    %c1_36 = arith.constant 1 : index
    %c0_37 = arith.constant 0 : index
    %c0_38 = arith.constant 0 : index
    %62 = vector.load %arg3[%c1_36, %c0_37, %c0_38] : memref<3x128x128xbf16, #tpu.memory_space<vmem>>, vector<1x128x128xbf16>
    %63 = vector.shape_cast %62 : vector<1x128x128xbf16> to vector<128x128xbf16>
    %cst_39 = arith.constant dense<0.000000e+00> : vector<32x128xf32>
    %64 = tpu.matmul %61, %63, %cst_39 {dimension_numbers = #tpu.dot_dimension_numbers<[1], [0], [0], [1], [0, 0, 1, 1], [], []>} : vector<32x128xbf16>, vector<128x128xbf16>, vector<32x128xf32> -> vector<32x128xf32>
    %65 = arith.addf %60, %64 : vector<32x128xf32>
    %66 = arith.truncf %56 : vector<32x128xf32> to vector<32x128xbf16>
    %c2_40 = arith.constant 2 : index
    %c0_41 = arith.constant 0 : index
    %c0_42 = arith.constant 0 : index
    %67 = vector.load %arg3[%c2_40, %c0_41, %c0_42] : memref<3x128x128xbf16, #tpu.memory_space<vmem>>, vector<1x128x128xbf16>
    %68 = vector.shape_cast %67 : vector<1x128x128xbf16> to vector<128x128xbf16>
    %cst_43 = arith.constant dense<0.000000e+00> : vector<32x128xf32>
    %69 = tpu.matmul %66, %68, %cst_43 {dimension_numbers = #tpu.dot_dimension_numbers<[1], [0], [0], [1], [0, 0, 1, 1], [], []>} : vector<32x128xbf16>, vector<128x128xbf16>, vector<32x128xf32> -> vector<32x128xf32>
    %70 = arith.addf %65, %69 : vector<32x128xf32>
    %c2_44 = arith.constant 2 : index
    %c0_45 = arith.constant 0 : index
    %71 = vector.load %arg4[%c2_44, %c0_45] : memref<4x8xf32, #tpu.memory_space<vmem>>, vector<1x8xf32>
    %c3 = arith.constant 3 : index
    %c0_46 = arith.constant 0 : index
    %72 = vector.load %arg4[%c3, %c0_46] : memref<4x8xf32, #tpu.memory_space<vmem>>, vector<1x8xf32>
    %cst_47 = arith.constant dense<0.000000e+00> : vector<128xf32>
    %73 = vector.multi_reduction <add>, %70, %cst_47 [0] : vector<32x128xf32> to vector<128xf32>
    %74 = vector.shape_cast %73 : vector<128xf32> to vector<1x128xf32>
    %cst_48 = arith.constant dense<0.000000e+00> : vector<1x8xf32>
    %75 = tpu.matmul %74, %0, %cst_48 {dimension_numbers = #tpu.dot_dimension_numbers<[1], [0], [0], [1], [0, 0, 1, 1], [], []>} : vector<1x128xf32>, vector<128x8xf32>, vector<1x8xf32> -> vector<1x8xf32>
    %cst_49 = arith.constant dense<0.000000e+00> : vector<1x128xf32>
    %76 = tpu.matmul %75, %1, %cst_49 {dimension_numbers = #tpu.dot_dimension_numbers<[1], [0], [0], [1], [0, 0, 1, 1], [], []>} : vector<1x8xf32>, vector<8x128xf32>, vector<1x128xf32> -> vector<1x128xf32>
    %77 = vector.broadcast %76 : vector<1x128xf32> to vector<32x128xf32>
    %78 = arith.subf %70, %77 : vector<32x128xf32>
    %79 = arith.mulf %78, %78 : vector<32x128xf32>
    %cst_50 = arith.constant dense<0.000000e+00> : vector<128xf32>
    %80 = vector.multi_reduction <add>, %79, %cst_50 [0] : vector<32x128xf32> to vector<128xf32>
    %81 = vector.shape_cast %80 : vector<128xf32> to vector<1x128xf32>
    %cst_51 = arith.constant dense<0.000000e+00> : vector<1x8xf32>
    %82 = tpu.matmul %81, %0, %cst_51 {dimension_numbers = #tpu.dot_dimension_numbers<[1], [0], [0], [1], [0, 0, 1, 1], [], []>} : vector<1x128xf32>, vector<128x8xf32>, vector<1x8xf32> -> vector<1x8xf32>
    %cst_52 = arith.constant 9.99999974E-6 : f32
    %83 = vector.broadcast %cst_52 : f32 to vector<1x8xf32>
    %84 = arith.addf %82, %83 : vector<1x8xf32>
    %85 = math.rsqrt %84 : vector<1x8xf32>
    %86 = arith.mulf %85, %71 : vector<1x8xf32>
    %87 = tpu.concatenate %86, %72 in 0 : vector<1x8xf32>, vector<1x8xf32> -> vector<2x8xf32>
    %cst_53 = arith.constant dense<0.000000e+00> : vector<2x128xf32>
    %88 = tpu.matmul %87, %1, %cst_53 {dimension_numbers = #tpu.dot_dimension_numbers<[1], [0], [0], [1], [0, 0, 1, 1], [], []>} : vector<2x8xf32>, vector<8x128xf32>, vector<2x128xf32> -> vector<2x128xf32>
    %89 = vector.extract_strided_slice %88 {offsets = [0, 0], sizes = [1, 128], strides = [1, 1]} : vector<2x128xf32> to vector<1x128xf32>
    %90 = vector.broadcast %89 : vector<1x128xf32> to vector<32x128xf32>
    %91 = arith.mulf %78, %90 : vector<32x128xf32>
    %92 = vector.extract_strided_slice %88 {offsets = [1, 0], sizes = [1, 128], strides = [1, 1]} : vector<2x128xf32> to vector<1x128xf32>
    %93 = vector.broadcast %92 : vector<1x128xf32> to vector<32x128xf32>
    %94 = arith.addf %91, %93 : vector<32x128xf32>
    %cst_54 = arith.constant 0.000000e+00 : f32
    %95 = vector.broadcast %cst_54 : f32 to vector<32x128xf32>
    %96 = arith.maximumf %94, %95 : vector<32x128xf32>
    %c0_55 = arith.constant 0 : index
    %c0_56 = arith.constant 0 : index
    %97 = vector.load %arg7[%c0_55, %c0_56] : memref<32x128xf32, #tpu.memory_space<vmem>>, vector<32x128xf32>
    tpu.vector_store %arg7[%c0_55, %c0_56], %96 {strides = array<i32>} : memref<32x128xf32, #tpu.memory_space<vmem>>, vector<32x128xf32>,
    return
  }
}

</mosaic_0001>

<llo_original>
// kernel: conv_block_encoder.1
$region0: #{conv_block_encoder.1}
  #allocation0 [shape = 'u32[]', space=smem, size = 0x4, offset = 0x4, fixed_abs, tag = 'smem constant byte address 0x4 - core index']
  #allocation1 [shape = 'u32[144,128]{1,0:T(1,128)}', space=vmem, size = 0x12000, scoped, tag = 'internal scratch']
  %s0 = inlined_call_operand.vmem [shape: f32[32,64], index: 0, kind: input, shape index: {}]
  %s1 = inlined_call_operand.vmem [shape: f32[32,2], index: 1, kind: input, shape index: {}]
  %s2 = inlined_call_operand.vmem [shape: bf16[3,64,128], index: 2, kind: input, shape index: {}]
  %s3 = inlined_call_operand.vmem [shape: bf16[3,128,128], index: 3, kind: input, shape index: {}]
  %s4 = inlined_call_operand.vmem [shape: f32[4,8], index: 4, kind: input, shape index: {}]
  %s5 = inlined_call_operand.vmem [shape: f32[128,8], index: 5, kind: input, shape index: {}]
  %s6 = inlined_call_operand.vmem [shape: f32[8,128], index: 6, kind: input, shape index: {}]
  %s7 = inlined_call_operand.vmem [shape: f32[32,128], index: 7, kind: output, shape index: {}]
  %s8 = sld [smem:[#allocation0]]
  $region38: #{conv_block_encoder.1} parent=0
    _
  %s10 = ssub.s32 1, %s8
  %s11 = scalar_select 0, %s10, %s8
  // Predicated region
  $region2: #{conv_block_encoder.1} parent=0 // pred_check
    _
  $region3: #{conv_block_encoder.1} parent=0 // pred_check_branch
    %13 = sbr.rel (0) target = $region5
  $region4: #{conv_block_encoder.1} parent=0 // pred_region
    _
  $region5: #{conv_block_encoder.1} parent=0 // pred_fallthru
    _
  // Predicated region
  $region6: #{conv_block_encoder.1} parent=0 // pred_check
    _
  $region7: #{conv_block_encoder.1} parent=0 // pred_check_branch
    %15 = sbr.rel (0) target = $region9
  $region8: #{conv_block_encoder.1} parent=0 // pred_region
    _
  $region9: #{conv_block_encoder.1} parent=0 // pred_fallthru
    _
  // Predicated region
  $region10: #{conv_block_encoder.1} parent=0 // pred_check
    _
  $region11: #{conv_block_encoder.1} parent=0 // pred_check_branch
    %17 = sbr.rel (0) target = $region13
  $region12: #{conv_block_encoder.1} parent=0 // pred_region
    _
  $region13: #{conv_block_encoder.1} parent=0 // pred_fallthru
    _
  // Predicated region
  $region14: #{conv_block_encoder.1} parent=0 // pred_check
    _
  $region15: #{conv_block_encoder.1} parent=0 // pred_check_branch
    %19 = sbr.rel (0) target = $region17
  $region16: #{conv_block_encoder.1} parent=0 // pred_region
    _
  $region17: #{conv_block_encoder.1} parent=0 // pred_fallthru
    _
  // Predicated region
  $region18: #{conv_block_encoder.1} parent=0 // pred_check
    _
  $region19: #{conv_block_encoder.1} parent=0 // pred_check_branch
    %21 = sbr.rel (0) target = $region21
  $region20: #{conv_block_encoder.1} parent=0 // pred_region
    _
  $region21: #{conv_block_encoder.1} parent=0 // pred_fallthru
    _
  // Predicated region
  $region22: #{conv_block_encoder.1} parent=0 // pred_check
    _
  $region23: #{conv_block_encoder.1} parent=0 // pred_check_branch
    %23 = sbr.rel (0) target = $region25
  $region24: #{conv_block_encoder.1} parent=0 // pred_region
    _
  $region25: #{conv_block_encoder.1} parent=0 // pred_fallthru
    _
  // Predicated region
  $region26: #{conv_block_encoder.1} parent=0 // pred_check
    _
  $region27: #{conv_block_encoder.1} parent=0 // pred_check_branch
    %25 = sbr.rel (0) target = $region29
  $region28: #{conv_block_encoder.1} parent=0 // pred_region
    _
  $region29: #{conv_block_encoder.1} parent=0 // pred_fallthru
    _
  %v27 = vld [vmem:[%s5] sm:$0xff]
  %v28 = vld [vmem:[%s5 + $0x8] sm:$0xff]
  %v29 = vld [vmem:[%s5 + $0x10] sm:$0xff]
  %v30 = vld [vmem:[%s5 + $0x18] sm:$0xff]
  %v31 = vld [vmem:[%s5 + $0x20] sm:$0xff]
  %v32 = vld [vmem:[%s5 + $0x28] sm:$0xff]
  %v33 = vld [vmem:[%s5 + $0x30] sm:$0xff]
  %v34 = vld [vmem:[%s5 + $0x38] sm:$0xff]
  %v35 = vld [vmem:[%s5 + $0x40] sm:$0xff]
  %v36 = vld [vmem:[%s5 + $0x48] sm:$0xff]
  %v37 = vld [vmem:[%s5 + $0x50] sm:$0xff]
  %v38 = vld [vmem:[%s5 + $0x58] sm:$0xff]
  %v39 = vld [vmem:[%s5 + $0x60] sm:$0xff]
  %v40 = vld [vmem:[%s5 + $0x68] sm:$0xff]
  %v41 = vld [vmem:[%s5 + $0x70] sm:$0xff]
  %v42 = vld [vmem:[%s5 + $0x78] sm:$0xff]
  %v43 = vld [vmem:[%s6] sm:$0xff]
  %v44 = vld [vmem:[%s1] sm:$0xff]
  %v45 = vld [vmem:[%s1 + $0x8] sm:$0xff]
  %v46 = vld [vmem:[%s1 + $0x10] sm:$0xff]
  %v47 = vld [vmem:[%s1 + $0x18] sm:$0xff]
  %v48 = vld [vmem:[%s0] sm:$0xff]
  %v49 = vld [vmem:[%s0 + $0x8] sm:$0xff]
  %v50 = vld [vmem:[%s0 + $0x10] sm:$0xff]
  %v51 = vld [vmem:[%s0 + $0x18] sm:$0xff]
  %v52 = vrot.slane %v48, 7
  %v53 = vrot.slane %v49, 7
  %v54 = vrot.slane %v50, 7
  %v55 = vrot.slane %v51, 7
  %v56 = vlaneseq
  %v57 = vshrl.u32 %v56, 7
  %vm58 = vcmp.lt.s32.totalorder %v57, 1
  %v59 = vsel %vm58, %v54, %v55
  %v60 = vsel %vm58, %v53, %v54
  %v61 = vsel %vm58, %v52, %v53
  %v62 = vsel %vm58, %v55, %v52
  %64 = vset.pattern.permute.xlu0 0
  %65 = vperm.xlu0 %64, %v44
  %v66 = vpop.permute.xlu0 %65
  %69 = vset.pattern.permute.xlu0 0
  %70 = vperm.xlu0 %69, %v45
  %v71 = vpop.permute.xlu0 %70
  %74 = vset.pattern.permute.xlu0 0
  %75 = vperm.xlu0 %74, %v46
  %v76 = vpop.permute.xlu0 %75
  %79 = vset.pattern.permute.xlu0 0
  %80 = vperm.xlu0 %79, %v47
  %v81 = vpop.permute.xlu0 %80
  %v83 = vmul.f32 %v62, %v66
  %v84 = vmul.f32 %v61, %v71
  %v85 = vmul.f32 %v60, %v76
  %v86 = vmul.f32 %v59, %v81
  %v87 = vrot.slane %v48, 1
  %v88 = vrot.slane %v49, 1
  %v89 = vrot.slane %v50, 1
  %v90 = vrot.slane %v51, 1
  %vm91 = vcmp.lt.s32.totalorder %v57, 7
  %v92 = vsel %vm91, %v89, %v90
  %v93 = vsel %vm91, %v88, %v89
  %v94 = vsel %vm91, %v87, %v88
  %v95 = vsel %vm91, %v90, %v87
  %96 = vset.pattern.permute.xlu0 1
  %97 = vperm.xlu0 %96, %v44
  %v98 = vpop.permute.xlu0 %97
  %100 = vset.pattern.permute.xlu0 1
  %101 = vperm.xlu0 %100, %v45
  %v102 = vpop.permute.xlu0 %101
  %104 = vset.pattern.permute.xlu0 1
  %105 = vperm.xlu0 %104, %v46
  %v106 = vpop.permute.xlu0 %105
  %108 = vset.pattern.permute.xlu0 1
  %109 = vperm.xlu0 %108, %v47
  %v110 = vpop.permute.xlu0 %109
  %v112 = vmul.f32 %v94, %v98
  %v113 = vmul.f32 %v93, %v102
  %v114 = vmul.f32 %v92, %v106
  %v115 = vmul.f32 %v95, %v110
  %v116 = vpack.c.bf16 %v84, %v83
  %v117 = vpack.c.bf16 %v86, %v85
  %v118 = vld [vmem:[%s2] sm:$0xf]
  %v119 = vld [vmem:[%s2 + $0x4] sm:$0xf]
  %v120 = vld [vmem:[%s2 + $0x8] sm:$0xf]
  %v121 = vld [vmem:[%s2 + $0xc] sm:$0xf]
  %v122 = vld [vmem:[%s2 + $0x10] sm:$0xf]
  %v123 = vld [vmem:[%s2 + $0x14] sm:$0xf]
  %v124 = vld [vmem:[%s2 + $0x18] sm:$0xf]
  %v125 = vld [vmem:[%s2 + $0x1c] sm:$0xf]
  %v126 = vpack.c.bf16 %v49, %v48
  %v127 = vpack.c.bf16 %v51, %v50
  %s128 = scalar_lea.vmem %s2, 32
  %v129 = vld [vmem:[%s128] sm:$0xf]
  %v130 = vld [vmem:[%s128 + $0x4] sm:$0xf]
  %v131 = vld [vmem:[%s128 + $0x8] sm:$0xf]
  %v132 = vld [vmem:[%s128 + $0xc] sm:$0xf]
  %v133 = vld [vmem:[%s128 + $0x10] sm:$0xf]
  %v134 = vld [vmem:[%s128 + $0x14] sm:$0xf]
  %v135 = vld [vmem:[%s128 + $0x18] sm:$0xf]
  %v136 = vld [vmem:[%s128 + $0x1c] sm:$0xf]
  %v145 = vunpack.c.l.b16 %v129
  %v146 = vunpack.c.l.b16 %v130
  %v147 = vunpack.c.l.b16 %v131
  %v148 = vunpack.c.l.b16 %v132
  %v149 = vunpack.c.l.b16 %v133
  %v150 = vunpack.c.l.b16 %v134
  %v151 = vunpack.c.l.b16 %v135
  %v152 = vunpack.c.l.b16 %v136
  %v153 = vpack.c.b16 %v146, %v145
  %v154 = vpack.c.b16 %v148, %v147
  %v155 = vpack.c.b16 %v150, %v149
  %v156 = vpack.c.b16 %v152, %v151
  %vm161 = vcmask 523264
  %v163 = vsel %vm161, %v126, 0
  %v166 = vsel %vm161, %v127, 0
  %168 = vmatprep.subr.bf16.mxu0 0
  %169 = vmatpush1.bf16.msra.mxu0 0
  %170 = vmatprep.subr.bf16.mxu0 0
  %171 = vmatpush1.bf16.msra.mxu0 0
  %172 = vmatprep.subr.bf16.mxu0 0
  %173 = vmatpush1.bf16.msra.mxu0 0
  %174 = vmatprep.subr.bf16.mxu0 0
  %175 = vmatpush1.bf16.msra.mxu0 0
  %176 = vmatprep.subr.bf16.mxu0 0
  %177 = vmatpush1.bf16.msra.mxu0 %v156
  %178 = vmatprep.subr.bf16.mxu0 0
  %179 = vmatpush1.bf16.msra.mxu0 %v155
  %180 = vmatprep.subr.bf16.mxu0 0
  %181 = vmatpush1.bf16.msra.mxu0 %v154
  %182 = vmatprep.subr.bf16.mxu0 0
  %183 = vmatpush1.bf16.msra.mxu0 %v153
  %184 = vmatprep.subr.bf16.mxu0 0
  %185 = vmatpush2.bf16.msra.mxu0 0
  %186 = vmatprep.subr.bf16.mxu0 0
  %187 = vmatpush2.bf16.msra.mxu0 0
  %188 = vmatprep.subr.bf16.mxu0 0
  %189 = vmatpush2.bf16.msra.mxu0 0
  %190 = vmatprep.subr.bf16.mxu0 0
  %191 = vmatpush2.bf16.msra.mxu0 0
  %192 = vmatprep.subr.bf16.mxu0 0
  %193 = vmatpush2.bf16.msra.mxu0 0
  %194 = vmatprep.subr.bf16.mxu0 0
  %195 = vmatpush2.bf16.msra.mxu0 0
  %196 = vmatprep.subr.bf16.mxu0 0
  %197 = vmatpush2.bf16.msra.mxu0 0
  %198 = vmatprep.subr.bf16.mxu0 0
  %199 = vmatpush2.bf16.msra.mxu0 0
  %200 = vmatprep.mubr.bf16.mxu0 0
  %201 = vmatmul.mubr.bf16.gmra.mxu0 %v163
  %v202 = vpop.f32.mrf.mxu0
  %v203 = vadd.f32 0.0, %v202
  %v204 = vpop.f32.mrf.mxu0
  %v205 = vpop.f32.mrf.mxu0
  %v206 = vadd.f32 0.0, %v205
  %v207 = vpop.f32.mrf.mxu0
  %208 = vmatprep.mubr.bf16.mxu0 0
  %209 = vmatmul.mubr.bf16.gmra.mxu0 %v166
  %v210 = vpop.f32.mrf.mxu0
  %v211 = vadd.f32 0.0, %v210
  %v212 = vpop.f32.mrf.mxu0
  %v213 = vpop.f32.mrf.mxu0
  %v214 = vadd.f32 0.0, %v213
  %v215 = vpop.f32.mrf.mxu0
  %216 = vdwg.mxu0
  %v225 = vunpack.c.l.b16 %v118
  %v226 = vunpack.c.l.b16 %v119
  %v227 = vunpack.c.l.b16 %v120
  %v228 = vunpack.c.l.b16 %v121
  %v229 = vunpack.c.l.b16 %v122
  %v230 = vunpack.c.l.b16 %v123
  %v231 = vunpack.c.l.b16 %v124
  %v232 = vunpack.c.l.b16 %v125
  %v233 = vpack.c.b16 %v226, %v225
  %v234 = vpack.c.b16 %v228, %v227
  %v235 = vpack.c.b16 %v230, %v229
  %v236 = vpack.c.b16 %v232, %v231
  %v242 = vsel %vm161, %v116, 0
  %v245 = vsel %vm161, %v117, 0
  %247 = vmatprep.subr.bf16.mxu0 0
  %248 = vmatpush1.bf16.msra.mxu0 0
  %249 = vmatprep.subr.bf16.mxu0 0
  %250 = vmatpush1.bf16.msra.mxu0 0
  %251 = vmatprep.subr.bf16.mxu0 0
  %252 = vmatpush1.bf16.msra.mxu0 0
  %253 = vmatprep.subr.bf16.mxu0 0
  %254 = vmatpush1.bf16.msra.mxu0 0
  %255 = vmatprep.subr.bf16.mxu0 0
  %256 = vmatpush1.bf16.msra.mxu0 %v236
  %257 = vmatprep.subr.bf16.mxu0 0
  %258 = vmatpush1.bf16.msra.mxu0 %v235
  %259 = vmatprep.subr.bf16.mxu0 0
  %260 = vmatpush1.bf16.msra.mxu0 %v234
  %261 = vmatprep.subr.bf16.mxu0 0
  %262 = vmatpush1.bf16.msra.mxu0 %v233
  %263 = vmatprep.subr.bf16.mxu0 0
  %264 = vmatpush2.bf16.msra.mxu0 0
  %265 = vmatprep.subr.bf16.mxu0 0
  %266 = vmatpush2.bf16.msra.mxu0 0
  %267 = vmatprep.subr.bf16.mxu0 0
  %268 = vmatpush2.bf16.msra.mxu0 0
  %269 = vmatprep.subr.bf16.mxu0 0
  %270 = vmatpush2.bf16.msra.mxu0 0
  %271 = vmatprep.subr.bf16.mxu0 0
  %272 = vmatpush2.bf16.msra.mxu0 0
  %273 = vmatprep.subr.bf16.mxu0 0
  %274 = vmatpush2.bf16.msra.mxu0 0
  %275 = vmatprep.subr.bf16.mxu0 0
  %276 = vmatpush2.bf16.msra.mxu0 0
  %277 = vmatprep.subr.bf16.mxu0 0
  %278 = vmatpush2.bf16.msra.mxu0 0
  %279 = vmatprep.mubr.bf16.mxu0 0
  %280 = vmatmul.mubr.bf16.gmra.mxu0 %v242
  %v281 = vpop.f32.mrf.mxu0
  %v282 = vadd.f32 %v203, %v281
  %v283 = vpop.f32.mrf.mxu0
  %v284 = vpop.f32.mrf.mxu0
  %v285 = vadd.f32 %v206, %v284
  %v286 = vpop.f32.mrf.mxu0
  %287 = vmatprep.mubr.bf16.mxu0 0
  %288 = vmatmul.mubr.bf16.gmra.mxu0 %v245
  %v289 = vpop.f32.mrf.mxu0
  %v290 = vadd.f32 %v211, %v289
  %v291 = vpop.f32.mrf.mxu0
  %v292 = vpop.f32.mrf.mxu0
  %v293 = vadd.f32 %v214, %v292
  %v294 = vpop.f32.mrf.mxu0
  %295 = vdwg.mxu0
  %v296 = vpack.c.bf16 %v113, %v112
  %v297 = vpack.c.bf16 %v115, %v114
  %s298 = scalar_lea.vmem %s2, 64
  %v299 = vld [vmem:[%s298] sm:$0xf]
  %v300 = vld [vmem:[%s298 + $0x4] sm:$0xf]
  %v301 = vld [vmem:[%s298 + $0x8] sm:$0xf]
  %v302 = vld [vmem:[%s298 + $0xc] sm:$0xf]
  %v303 = vld [vmem:[%s298 + $0x10] sm:$0xf]
  %v304 = vld [vmem:[%s298 + $0x14] sm:$0xf]
  %v305 = vld [vmem:[%s298 + $0x18] sm:$0xf]
  %v306 = vld [vmem:[%s298 + $0x1c] sm:$0xf]
  %v315 = vunpack.c.l.b16 %v299
  %v316 = vunpack.c.l.b16 %v300
  %v317 = vunpack.c.l.b16 %v301
  %v318 = vunpack.c.l.b16 %v302
  %v319 = vunpack.c.l.b16 %v303
  %v320 = vunpack.c.l.b16 %v304
  %v321 = vunpack.c.l.b16 %v305
  %v322 = vunpack.c.l.b16 %v306
  %v323 = vpack.c.b16 %v316, %v315
  %v324 = vpack.c.b16 %v318, %v317
  %v325 = vpack.c.b16 %v320, %v319
  %v326 = vpack.c.b16 %v322, %v321
  %v332 = vsel %vm161, %v296, 0
  %v335 = vsel %vm161, %v297, 0
  %337 = vmatprep.subr.bf16.mxu0 0
  %338 = vmatpush1.bf16.msra.mxu0 0
  %339 = vmatprep.subr.bf16.mxu0 0
  %340 = vmatpush1.bf16.msra.mxu0 0
  %341 = vmatprep.subr.bf16.mxu0 0
  %342 = vmatpush1.bf16.msra.mxu0 0
  %343 = vmatprep.subr.bf16.mxu0 0
  %344 = vmatpush1.bf16.msra.mxu0 0
  %345 = vmatprep.subr.bf16.mxu0 0
  %346 = vmatpush1.bf16.msra.mxu0 %v326
  %347 = vmatprep.subr.bf16.mxu0 0
  %348 = vmatpush1.bf16.msra.mxu0 %v325
  %349 = vmatprep.subr.bf16.mxu0 0
  %350 = vmatpush1.bf16.msra.mxu0 %v324
  %351 = vmatprep.subr.bf16.mxu0 0
  %352 = vmatpush1.bf16.msra.mxu0 %v323
  %353 = vmatprep.subr.bf16.mxu0 0
  %354 = vmatpush2.bf16.msra.mxu0 0
  %355 = vmatprep.subr.bf16.mxu0 0
  %356 = vmatpush2.bf16.msra.mxu0 0
  %357 = vmatprep.subr.bf16.mxu0 0
  %358 = vmatpush2.bf16.msra.mxu0 0
  %359 = vmatprep.subr.bf16.mxu0 0
  %360 = vmatpush2.bf16.msra.mxu0 0
  %361 = vmatprep.subr.bf16.mxu0 0
  %362 = vmatpush2.bf16.msra.mxu0 0
  %363 = vmatprep.subr.bf16.mxu0 0
  %364 = vmatpush2.bf16.msra.mxu0 0
  %365 = vmatprep.subr.bf16.mxu0 0
  %366 = vmatpush2.bf16.msra.mxu0 0
  %367 = vmatprep.subr.bf16.mxu0 0
  %368 = vmatpush2.bf16.msra.mxu0 0
  %369 = vmatprep.mubr.bf16.mxu0 0
  %370 = vmatmul.mubr.bf16.gmra.mxu0 %v332
  %v371 = vpop.f32.mrf.mxu0
  %v372 = vadd.f32 0.0, %v371
  %v373 = vpop.f32.mrf.mxu0
  %v374 = vpop.f32.mrf.mxu0
  %v375 = vadd.f32 0.0, %v374
  %v376 = vpop.f32.mrf.mxu0
  %377 = vmatprep.mubr.bf16.mxu0 0
  %378 = vmatmul.mubr.bf16.gmra.mxu0 %v335
  %v379 = vpop.f32.mrf.mxu0
  %v380 = vadd.f32 0.0, %v379
  %v381 = vpop.f32.mrf.mxu0
  %v382 = vpop.f32.mrf.mxu0
  %v383 = vadd.f32 0.0, %v382
  %v384 = vpop.f32.mrf.mxu0
  %385 = vdwg.mxu0
  %v386 = vadd.f32 %v282, %v372
  %v387 = vadd.f32 %v285, %v375
  %v388 = vadd.f32 %v290, %v380
  %v389 = vadd.f32 %v293, %v383
  %v390 = vld [vmem:[%s4] sm:$0x1]
  %v391 = vld [vmem:[%s4 + $0x1] sm:$0x1]
  %v392 = vadd.f32 %v386, %v387
  %v393 = vadd.f32 %v392, %v388
  %v394 = vadd.f32 %v393, %v389
  %v395 = vrot.slane %v394, 4
  %v396 = vadd.f32 %v394, %v395
  %v397 = vrot.slane %v396, 2
  %v398 = vadd.f32 %v396, %v397
  %v399 = vrot.slane %v398, 1
  %v400 = vadd.f32 %v398, %v399
  %401 = vmatprep.subr.mxu0 0.0
  %402 = vmatpush1.msra.mxu0 %v42
  %403 = vmatprep.subr.mxu0 0.0
  %404 = vmatpush1.msra.mxu0 %v41
  %405 = vmatprep.subr.mxu0 0.0
  %406 = vmatpush1.msra.mxu0 %v40
  %407 = vmatprep.subr.mxu0 0.0
  %408 = vmatpush1.msra.mxu0 %v39
  %409 = vmatprep.subr.mxu0 0.0
  %410 = vmatpush1.msra.mxu0 %v38
  %411 = vmatprep.subr.mxu0 0.0
  %412 = vmatpush1.msra.mxu0 %v37
  %413 = vmatprep.subr.mxu0 0.0
  %414 = vmatpush1.msra.mxu0 %v36
  %415 = vmatprep.subr.mxu0 0.0
  %416 = vmatpush1.msra.mxu0 %v35
  %417 = vmatprep.subr.mxu0 0.0
  %418 = vmatpush1.msra.mxu0 %v34
  %419 = vmatprep.subr.mxu0 0.0
  %420 = vmatpush1.msra.mxu0 %v33
  %421 = vmatprep.subr.mxu0 0.0
  %422 = vmatpush1.msra.mxu0 %v32
  %423 = vmatprep.subr.mxu0 0.0
  %424 = vmatpush1.msra.mxu0 %v31
  %425 = vmatprep.subr.mxu0 0.0
  %426 = vmatpush1.msra.mxu0 %v30
  %427 = vmatprep.subr.mxu0 0.0
  %428 = vmatpush1.msra.mxu0 %v29
  %429 = vmatprep.subr.mxu0 0.0
  %430 = vmatpush1.msra.mxu0 %v28
  %431 = vmatprep.subr.mxu0 0.0
  %432 = vmatpush1.msra.mxu0 %v27
  %433 = vmatprep.subr.mxu0 0.0
  %434 = vmatpush2.msra.mxu0 0.0
  %435 = vmatprep.subr.mxu0 0.0
  %436 = vmatpush2.msra.mxu0 0.0
  %437 = vmatprep.subr.mxu0 0.0
  %438 = vmatpush2.msra.mxu0 0.0
  %439 = vmatprep.subr.mxu0 0.0
  %440 = vmatpush2.msra.mxu0 0.0
  %441 = vmatprep.subr.mxu0 0.0
  %442 = vmatpush2.msra.mxu0 0.0
  %443 = vmatprep.subr.mxu0 0.0
  %444 = vmatpush2.msra.mxu0 0.0
  %445 = vmatprep.subr.mxu0 0.0
  %446 = vmatpush2.msra.mxu0 0.0
  %447 = vmatprep.subr.mxu0 0.0
  %448 = vmatpush2.msra.mxu0 0.0
  %449 = vmatprep.subr.mxu0 0.0
  %450 = vmatpush2.msra.mxu0 0.0
  %451 = vmatprep.subr.mxu0 0.0
  %452 = vmatpush2.msra.mxu0 0.0
  %453 = vmatprep.subr.mxu0 0.0
  %454 = vmatpush2.msra.mxu0 0.0
  %455 = vmatprep.subr.mxu0 0.0
  %456 = vmatpush2.msra.mxu0 0.0
  %457 = vmatprep.subr.mxu0 0.0
  %458 = vmatpush2.msra.mxu0 0.0
  %459 = vmatprep.subr.mxu0 0.0
  %460 = vmatpush2.msra.mxu0 0.0
  %461 = vmatprep.subr.mxu0 0.0
  %462 = vmatpush2.msra.mxu0 0.0
  %463 = vmatprep.subr.mxu0 0.0
  %464 = vmatpush2.msra.mxu0 0.0
  %465 = vmatprep.mubr.f32.mxu0 0.0
  %466 = vmatmul.mubr.f32.gmra.mxu0 %v400
  %v467 = vpop.f32.mrf.mxu0
  %v468 = vadd.f32 0.0, %v467
  %v469 = vpop.f32.mrf.mxu0
  %470 = vdwg.mxu0
  %vm471 = vcmask 64512
  %v473 = vsel %vm471, %v468, 0
  %475 = vmatprep.subr.mxu0 0.0
  %476 = vmatpush1.msra.mxu0 0.0
  %477 = vmatprep.subr.mxu0 0.0
  %478 = vmatpush1.msra.mxu0 0.0
  %479 = vmatprep.subr.mxu0 0.0
  %480 = vmatpush1.msra.mxu0 0.0
  %481 = vmatprep.subr.mxu0 0.0
  %482 = vmatpush1.msra.mxu0 0.0
  %483 = vmatprep.subr.mxu0 0.0
  %484 = vmatpush1.msra.mxu0 0.0
  %485 = vmatprep.subr.mxu0 0.0
  %486 = vmatpush1.msra.mxu0 0.0
  %487 = vmatprep.subr.mxu0 0.0
  %488 = vmatpush1.msra.mxu0 0.0
  %489 = vmatprep.subr.mxu0 0.0
  %490 = vmatpush1.msra.mxu0 0.0
  %491 = vmatprep.subr.mxu0 0.0
  %492 = vmatpush1.msra.mxu0 0.0
  %493 = vmatprep.subr.mxu0 0.0
  %494 = vmatpush1.msra.mxu0 0.0
  %495 = vmatprep.subr.mxu0 0.0
  %496 = vmatpush1.msra.mxu0 0.0
  %497 = vmatprep.subr.mxu0 0.0
  %498 = vmatpush1.msra.mxu0 0.0
  %499 = vmatprep.subr.mxu0 0.0
  %500 = vmatpush1.msra.mxu0 0.0
  %501 = vmatprep.subr.mxu0 0.0
  %502 = vmatpush1.msra.mxu0 0.0
  %503 = vmatprep.subr.mxu0 0.0
  %504 = vmatpush1.msra.mxu0 0.0
  %505 = vmatprep.subr.mxu0 0.0
  %506 = vmatpush1.msra.mxu0 %v43
  %507 = vmatprep.subr.mxu0 0.0
  %508 = vmatpush2.msra.mxu0 0.0
  %509 = vmatprep.subr.mxu0 0.0
  %510 = vmatpush2.msra.mxu0 0.0
  %511 = vmatprep.subr.mxu0 0.0
  %512 = vmatpush2.msra.mxu0 0.0
  %513 = vmatprep.subr.mxu0 0.0
  %514 = vmatpush2.msra.mxu0 0.0
  %515 = vmatprep.subr.mxu0 0.0
  %516 = vmatpush2.msra.mxu0 0.0
  %517 = vmatprep.subr.mxu0 0.0
  %518 = vmatpush2.msra.mxu0 0.0
  %519 = vmatprep.subr.mxu0 0.0
  %520 = vmatpush2.msra.mxu0 0.0
  %521 = vmatprep.subr.mxu0 0.0
  %522 = vmatpush2.msra.mxu0 0.0
  %523 = vmatprep.subr.mxu0 0.0
  %524 = vmatpush2.msra.mxu0 0.0
  %525 = vmatprep.subr.mxu0 0.0
  %526 = vmatpush2.msra.mxu0 0.0
  %527 = vmatprep.subr.mxu0 0.0
  %528 = vmatpush2.msra.mxu0 0.0
  %529 = vmatprep.subr.mxu0 0.0
  %530 = vmatpush2.msra.mxu0 0.0
  %531 = vmatprep.subr.mxu0 0.0
  %532 = vmatpush2.msra.mxu0 0.0
  %533 = vmatprep.subr.mxu0 0.0
  %534 = vmatpush2.msra.mxu0 0.0
  %535 = vmatprep.subr.mxu0 0.0
  %536 = vmatpush2.msra.mxu0 0.0
  %537 = vmatprep.subr.mxu0 0.0
  %538 = vmatpush2.msra.mxu0 0.0
  %539 = vmatprep.mubr.f32.mxu0 0.0
  %540 = vmatmul.mubr.f32.gmra.mxu0 %v473
  %v541 = vpop.f32.mrf.mxu0
  %v542 = vadd.f32 0.0, %v541
  %v543 = vpop.f32.mrf.mxu0
  %544 = vdwg.mxu0
  %v545 = vlaneseq
  %v546 = vshrl.u32 %v545, 7
  %v547 = vsub.s32 0, %v546
  %v548 = vrot.slane %v542, %v547
  %v549 = vsub.f32 %v386, %v548
  %v550 = vsub.f32 %v387, %v548
  %v551 = vsub.f32 %v388, %v548
  %v552 = vsub.f32 %v389, %v548
  %v553 = vmul.f32 %v549, %v549
  %v554 = vmul.f32 %v550, %v550
  %v555 = vmul.f32 %v551, %v551
  %v556 = vmul.f32 %v552, %v552
  %v557 = vadd.f32 %v553, %v554
  %v558 = vadd.f32 %v557, %v555
  %v559 = vadd.f32 %v558, %v556
  %v560 = vrot.slane %v559, 4
  %v561 = vadd.f32 %v559, %v560
  %v562 = vrot.slane %v561, 2
  %v563 = vadd.f32 %v561, %v562
  %v564 = vrot.slane %v563, 1
  %v565 = vadd.f32 %v563, %v564
  %566 = vmatprep.subr.mxu0 0.0
  %567 = vmatpush1.msra.mxu0 %v42
  %568 = vmatprep.subr.mxu0 0.0
  %569 = vmatpush1.msra.mxu0 %v41
  %570 = vmatprep.subr.mxu0 0.0
  %571 = vmatpush1.msra.mxu0 %v40
  %572 = vmatprep.subr.mxu0 0.0
  %573 = vmatpush1.msra.mxu0 %v39
  %574 = vmatprep.subr.mxu0 0.0
  %575 = vmatpush1.msra.mxu0 %v38
  %576 = vmatprep.subr.mxu0 0.0
  %577 = vmatpush1.msra.mxu0 %v37
  %578 = vmatprep.subr.mxu0 0.0
  %579 = vmatpush1.msra.mxu0 %v36
  %580 = vmatprep.subr.mxu0 0.0
  %581 = vmatpush1.msra.mxu0 %v35
  %582 = vmatprep.subr.mxu0 0.0
  %583 = vmatpush1.msra.mxu0 %v34
  %584 = vmatprep.subr.mxu0 0.0
  %585 = vmatpush1.msra.mxu0 %v33
  %586 = vmatprep.subr.mxu0 0.0
  %587 = vmatpush1.msra.mxu0 %v32
  %588 = vmatprep.subr.mxu0 0.0
  %589 = vmatpush1.msra.mxu0 %v31
  %590 = vmatprep.subr.mxu0 0.0
  %591 = vmatpush1.msra.mxu0 %v30
  %592 = vmatprep.subr.mxu0 0.0
  %593 = vmatpush1.msra.mxu0 %v29
  %594 = vmatprep.subr.mxu0 0.0
  %595 = vmatpush1.msra.mxu0 %v28
  %596 = vmatprep.subr.mxu0 0.0
  %597 = vmatpush1.msra.mxu0 %v27
  %598 = vmatprep.subr.mxu0 0.0
  %599 = vmatpush2.msra.mxu0 0.0
  %600 = vmatprep.subr.mxu0 0.0
  %601 = vmatpush2.msra.mxu0 0.0
  %602 = vmatprep.subr.mxu0 0.0
  %603 = vmatpush2.msra.mxu0 0.0
  %604 = vmatprep.subr.mxu0 0.0
  %605 = vmatpush2.msra.mxu0 0.0
  %606 = vmatprep.subr.mxu0 0.0
  %607 = vmatpush2.msra.mxu0 0.0
  %608 = vmatprep.subr.mxu0 0.0
  %609 = vmatpush2.msra.mxu0 0.0
  %610 = vmatprep.subr.mxu0 0.0
  %611 = vmatpush2.msra.mxu0 0.0
  %612 = vmatprep.subr.mxu0 0.0
  %613 = vmatpush2.msra.mxu0 0.0
  %614 = vmatprep.subr.mxu0 0.0
  %615 = vmatpush2.msra.mxu0 0.0
  %616 = vmatprep.subr.mxu0 0.0
  %617 = vmatpush2.msra.mxu0 0.0
  %618 = vmatprep.subr.mxu0 0.0
  %619 = vmatpush2.msra.mxu0 0.0
  %620 = vmatprep.subr.mxu0 0.0
  %621 = vmatpush2.msra.mxu0 0.0
  %622 = vmatprep.subr.mxu0 0.0
  %623 = vmatpush2.msra.mxu0 0.0
  %624 = vmatprep.subr.mxu0 0.0
  %625 = vmatpush2.msra.mxu0 0.0
  %626 = vmatprep.subr.mxu0 0.0
  %627 = vmatpush2.msra.mxu0 0.0
  %628 = vmatprep.subr.mxu0 0.0
  %629 = vmatpush2.msra.mxu0 0.0
  %630 = vmatprep.mubr.f32.mxu0 0.0
  %631 = vmatmul.mubr.f32.gmra.mxu0 %v565
  %v632 = vpop.f32.mrf.mxu0
  %v633 = vadd.f32 1e-05, %v632
  %v634 = vpop.f32.mrf.mxu0
  %635 = vdwg.mxu0
  %v636 = vrsqrt.pop %v633
  %v637 = vmul.f32 %v636, %v390
  %v639 = vrot.slane %v391, 7
  %vm641 = vcmask 1040384
  %v642 = vsel %vm641, %v637, %v639
  %v644 = vsel %vm471, %v642, 0
  %646 = vmatprep.subr.mxu0 0.0
  %647 = vmatpush1.msra.mxu0 0.0
  %648 = vmatprep.subr.mxu0 0.0
  %649 = vmatpush1.msra.mxu0 0.0
  %650 = vmatprep.subr.mxu0 0.0
  %651 = vmatpush1.msra.mxu0 0.0
  %652 = vmatprep.subr.mxu0 0.0
  %653 = vmatpush1.msra.mxu0 0.0
  %654 = vmatprep.subr.mxu0 0.0
  %655 = vmatpush1.msra.mxu0 0.0
  %656 = vmatprep.subr.mxu0 0.0
  %657 = vmatpush1.msra.mxu0 0.0
  %658 = vmatprep.subr.mxu0 0.0
  %659 = vmatpush1.msra.mxu0 0.0
  %660 = vmatprep.subr.mxu0 0.0
  %661 = vmatpush1.msra.mxu0 0.0
  %662 = vmatprep.subr.mxu0 0.0
  %663 = vmatpush1.msra.mxu0 0.0
  %664 = vmatprep.subr.mxu0 0.0
  %665 = vmatpush1.msra.mxu0 0.0
  %666 = vmatprep.subr.mxu0 0.0
  %667 = vmatpush1.msra.mxu0 0.0
  %668 = vmatprep.subr.mxu0 0.0
  %669 = vmatpush1.msra.mxu0 0.0
  %670 = vmatprep.subr.mxu0 0.0
  %671 = vmatpush1.msra.mxu0 0.0
  %672 = vmatprep.subr.mxu0 0.0
  %673 = vmatpush1.msra.mxu0 0.0
  %674 = vmatprep.subr.mxu0 0.0
  %675 = vmatpush1.msra.mxu0 0.0
  %676 = vmatprep.subr.mxu0 0.0
  %677 = vmatpush1.msra.mxu0 %v43
  %678 = vmatprep.subr.mxu0 0.0
  %679 = vmatpush2.msra.mxu0 0.0
  %680 = vmatprep.subr.mxu0 0.0
  %681 = vmatpush2.msra.mxu0 0.0
  %682 = vmatprep.subr.mxu0 0.0
  %683 = vmatpush2.msra.mxu0 0.0
  %684 = vmatprep.subr.mxu0 0.0
  %685 = vmatpush2.msra.mxu0 0.0
  %686 = vmatprep.subr.mxu0 0.0
  %687 = vmatpush2.msra.mxu0 0.0
  %688 = vmatprep.subr.mxu0 0.0
  %689 = vmatpush2.msra.mxu0 0.0
  %690 = vmatprep.subr.mxu0 0.0
  %691 = vmatpush2.msra.mxu0 0.0
  %692 = vmatprep.subr.mxu0 0.0
  %693 = vmatpush2.msra.mxu0 0.0
  %694 = vmatprep.subr.mxu0 0.0
  %695 = vmatpush2.msra.mxu0 0.0
  %696 = vmatprep.subr.mxu0 0.0
  %697 = vmatpush2.msra.mxu0 0.0
  %698 = vmatprep.subr.mxu0 0.0
  %699 = vmatpush2.msra.mxu0 0.0
  %700 = vmatprep.subr.mxu0 0.0
  %701 = vmatpush2.msra.mxu0 0.0
  %702 = vmatprep.subr.mxu0 0.0
  %703 = vmatpush2.msra.mxu0 0.0
  %704 = vmatprep.subr.mxu0 0.0
  %705 = vmatpush2.msra.mxu0 0.0
  %706 = vmatprep.subr.mxu0 0.0
  %707 = vmatpush2.msra.mxu0 0.0
  %708 = vmatprep.subr.mxu0 0.0
  %709 = vmatpush2.msra.mxu0 0.0
  %710 = vmatprep.mubr.f32.mxu0 0.0
  %711 = vmatmul.mubr.f32.gmra.mxu0 %v644
  %v712 = vpop.f32.mrf.mxu0
  %v713 = vadd.f32 0.0, %v712
  %v714 = vpop.f32.mrf.mxu0
  %715 = vdwg.mxu0
  %v716 = vlaneseq
  %v717 = vshrl.u32 %v716, 7
  %v718 = vsub.s32 0, %v717
  %v719 = vrot.slane %v713, %v718
  %v720 = vmul.f32 %v549, %v719
  %v721 = vmul.f32 %v550, %v719
  %v722 = vmul.f32 %v551, %v719
  %v723 = vmul.f32 %v552, %v719
  %v724 = vlaneseq
  %v725 = vshrl.u32 %v724, 7
  %v726 = vsub.s32 1, %v725
  %v727 = vrot.slane %v713, %v726
  %v728 = vadd.f32 %v720, %v727
  %v729 = vadd.f32 %v721, %v727
  %v730 = vadd.f32 %v722, %v727
  %v731 = vadd.f32 %v723, %v727
  %v732 = vmax.f32 %v728, 0.0
  %v733 = vmax.f32 %v729, 0.0
  %v734 = vmax.f32 %v730, 0.0
  %v735 = vmax.f32 %v731, 0.0
  %v736 = vrot.slane %v732, 7
  %v737 = vrot.slane %v733, 7
  %v738 = vrot.slane %v734, 7
  %v739 = vrot.slane %v735, 7
  %v740 = vsel %vm58, %v738, %v739
  %v741 = vsel %vm58, %v737, %v738
  %v742 = vsel %vm58, %v736, %v737
  %v743 = vsel %vm58, %v739, %v736
  %v744 = vmul.f32 %v743, %v66
  %v745 = vmul.f32 %v742, %v71
  %v746 = vmul.f32 %v741, %v76
  %v747 = vmul.f32 %v740, %v81
  %v748 = vrot.slane %v732, 1
  %v749 = vrot.slane %v733, 1
  %v750 = vrot.slane %v734, 1
  %v751 = vrot.slane %v735, 1
  %v752 = vsel %vm91, %v750, %v751
  %v753 = vsel %vm91, %v749, %v750
  %v754 = vsel %vm91, %v748, %v749
  %v755 = vsel %vm91, %v751, %v748
  %v756 = vmul.f32 %v754, %v98
  %v757 = vmul.f32 %v753, %v102
  %v758 = vmul.f32 %v752, %v106
  %v759 = vmul.f32 %v755, %v110
  %v760 = vpack.c.bf16 %v745, %v744
  %v761 = vpack.c.bf16 %v747, %v746
  %v762 = vld [vmem:[%s3] sm:$0xf]
  %v763 = vld [vmem:[%s3 + $0x4] sm:$0xf]
  %v764 = vld [vmem:[%s3 + $0x8] sm:$0xf]
  %v765 = vld [vmem:[%s3 + $0xc] sm:$0xf]
  %v766 = vld [vmem:[%s3 + $0x10] sm:$0xf]
  %v767 = vld [vmem:[%s3 + $0x14] sm:$0xf]
  %v768 = vld [vmem:[%s3 + $0x18] sm:$0xf]
  %v769 = vld [vmem:[%s3 + $0x1c] sm:$0xf]
  %v770 = vld [vmem:[%s3 + $0x20] sm:$0xf]
  %v771 = vld [vmem:[%s3 + $0x24] sm:$0xf]
  %v772 = vld [vmem:[%s3 + $0x28] sm:$0xf]
  %v773 = vld [vmem:[%s3 + $0x2c] sm:$0xf]
  %v774 = vld [vmem:[%s3 + $0x30] sm:$0xf]
  %v775 = vld [vmem:[%s3 + $0x34] sm:$0xf]
  %v776 = vld [vmem:[%s3 + $0x38] sm:$0xf]
  %v777 = vld [vmem:[%s3 + $0x3c] sm:$0xf]
  %v778 = vpack.c.bf16 %v733, %v732
  %v779 = vpack.c.bf16 %v735, %v734
  %s780 = scalar_lea.vmem %s3, 64
  %v781 = vld [vmem:[%s780] sm:$0xf]
  %v782 = vld [vmem:[%s780 + $0x4] sm:$0xf]
  %v783 = vld [vmem:[%s780 + $0x8] sm:$0xf]
  %v784 = vld [vmem:[%s780 + $0xc] sm:$0xf]
  %v785 = vld [vmem:[%s780 + $0x10] sm:$0xf]
  %v786 = vld [vmem:[%s780 + $0x14] sm:$0xf]
  %v787 = vld [vmem:[%s780 + $0x18] sm:$0xf]
  %v788 = vld [vmem:[%s780 + $0x1c] sm:$0xf]
  %v789 = vld [vmem:[%s780 + $0x20] sm:$0xf]
  %v790 = vld [vmem:[%s780 + $0x24] sm:$0xf]
  %v791 = vld [vmem:[%s780 + $0x28] sm:$0xf]
  %v792 = vld [vmem:[%s780 + $0x2c] sm:$0xf]
  %v793 = vld [vmem:[%s780 + $0x30] sm:$0xf]
  %v794 = vld [vmem:[%s780 + $0x34] sm:$0xf]
  %v795 = vld [vmem:[%s780 + $0x38] sm:$0xf]
  %v796 = vld [vmem:[%s780 + $0x3c] sm:$0xf]
  %v813 = vunpack.c.l.b16 %v781
  %v814 = vunpack.c.l.b16 %v782
  %v815 = vunpack.c.l.b16 %v783
  %v816 = vunpack.c.l.b16 %v784
  %v817 = vunpack.c.l.b16 %v785
  %v818 = vunpack.c.l.b16 %v786
  %v819 = vunpack.c.l.b16 %v787
  %v820 = vunpack.c.l.b16 %v788
  %v821 = vunpack.c.l.b16 %v789
  %v822 = vunpack.c.l.b16 %v790
  %v823 = vunpack.c.l.b16 %v791
  %v824 = vunpack.c.l.b16 %v792
  %v825 = vunpack.c.l.b16 %v793
  %v826 = vunpack.c.l.b16 %v794
  %v827 = vunpack.c.l.b16 %v795
  %v828 = vunpack.c.l.b16 %v796
  %v829 = vpack.c.b16 %v814, %v813
  %v830 = vpack.c.b16 %v816, %v815
  %v831 = vpack.c.b16 %v818, %v817
  %v832 = vpack.c.b16 %v820, %v819
  %v833 = vpack.c.b16 %v822, %v821
  %v834 = vpack.c.b16 %v824, %v823
  %v835 = vpack.c.b16 %v826, %v825
  %v836 = vpack.c.b16 %v828, %v827
  %845 = vmatprep.subr.bf16.mxu0 0
  %846 = vmatpush1.bf16.msra.mxu0 %v836
  %847 = vmatprep.subr.bf16.mxu0 0
  %848 = vmatpush1.bf16.msra.mxu0 %v835
  %849 = vmatprep.subr.bf16.mxu0 0
  %850 = vmatpush1.bf16.msra.mxu0 %v834
  %851 = vmatprep.subr.bf16.mxu0 0
  %852 = vmatpush1.bf16.msra.mxu0 %v833
  %853 = vmatprep.subr.bf16.mxu0 0
  %854 = vmatpush1.bf16.msra.mxu0 %v832
  %855 = vmatprep.subr.bf16.mxu0 0
  %856 = vmatpush1.bf16.msra.mxu0 %v831
  %857 = vmatprep.subr.bf16.mxu0 0
  %858 = vmatpush1.bf16.msra.mxu0 %v830
  %859 = vmatprep.subr.bf16.mxu0 0
  %860 = vmatpush1.bf16.msra.mxu0 %v829
  %861 = vmatprep.subr.bf16.mxu0 0
  %862 = vmatpush2.bf16.msra.mxu0 0
  %863 = vmatprep.subr.bf16.mxu0 0
  %864 = vmatpush2.bf16.msra.mxu0 0
  %865 = vmatprep.subr.bf16.mxu0 0
  %866 = vmatpush2.bf16.msra.mxu0 0
  %867 = vmatprep.subr.bf16.mxu0 0
  %868 = vmatpush2.bf16.msra.mxu0 0
  %869 = vmatprep.subr.bf16.mxu0 0
  %870 = vmatpush2.bf16.msra.mxu0 0
  %871 = vmatprep.subr.bf16.mxu0 0
  %872 = vmatpush2.bf16.msra.mxu0 0
  %873 = vmatprep.subr.bf16.mxu0 0
  %874 = vmatpush2.bf16.msra.mxu0 0
  %875 = vmatprep.subr.bf16.mxu0 0
  %876 = vmatpush2.bf16.msra.mxu0 0
  %877 = vmatprep.mubr.bf16.mxu0 0
  %878 = vmatmul.mubr.bf16.gmra.mxu0 %v778
  %v879 = vpop.f32.mrf.mxu0
  %v880 = vadd.f32 0.0, %v879
  %v881 = vpop.f32.mrf.mxu0
  %v882 = vpop.f32.mrf.mxu0
  %v883 = vadd.f32 0.0, %v882
  %v884 = vpop.f32.mrf.mxu0
  %885 = vmatprep.mubr.bf16.mxu0 0
  %886 = vmatmul.mubr.bf16.gmra.mxu0 %v779
  %v887 = vpop.f32.mrf.mxu0
  %v888 = vadd.f32 0.0, %v887
  %v889 = vpop.f32.mrf.mxu0
  %v890 = vpop.f32.mrf.mxu0
  %v891 = vadd.f32 0.0, %v890
  %v892 = vpop.f32.mrf.mxu0
  %893 = vdwg.mxu0
  %v910 = vunpack.c.l.b16 %v762
  %v911 = vunpack.c.l.b16 %v763
  %v912 = vunpack.c.l.b16 %v764
  %v913 = vunpack.c.l.b16 %v765
  %v914 = vunpack.c.l.b16 %v766
  %v915 = vunpack.c.l.b16 %v767
  %v916 = vunpack.c.l.b16 %v768
  %v917 = vunpack.c.l.b16 %v769
  %v918 = vunpack.c.l.b16 %v770
  %v919 = vunpack.c.l.b16 %v771
  %v920 = vunpack.c.l.b16 %v772
  %v921 = vunpack.c.l.b16 %v773
  %v922 = vunpack.c.l.b16 %v774
  %v923 = vunpack.c.l.b16 %v775
  %v924 = vunpack.c.l.b16 %v776
  %v925 = vunpack.c.l.b16 %v777
  %v926 = vpack.c.b16 %v911, %v910
  %v927 = vpack.c.b16 %v913, %v912
  %v928 = vpack.c.b16 %v915, %v914
  %v929 = vpack.c.b16 %v917, %v916
  %v930 = vpack.c.b16 %v919, %v918
  %v931 = vpack.c.b16 %v921, %v920
  %v932 = vpack.c.b16 %v923, %v922
  %v933 = vpack.c.b16 %v925, %v924
  %942 = vmatprep.subr.bf16.mxu0 0
  %943 = vmatpush1.bf16.msra.mxu0 %v933
  %944 = vmatprep.subr.bf16.mxu0 0
  %945 = vmatpush1.bf16.msra.mxu0 %v932
  %946 = vmatprep.subr.bf16.mxu0 0
  %947 = vmatpush1.bf16.msra.mxu0 %v931
  %948 = vmatprep.subr.bf16.mxu0 0
  %949 = vmatpush1.bf16.msra.mxu0 %v930
  %950 = vmatprep.subr.bf16.mxu0 0
  %951 = vmatpush1.bf16.msra.mxu0 %v929
  %952 = vmatprep.subr.bf16.mxu0 0
  %953 = vmatpush1.bf16.msra.mxu0 %v928
  %954 = vmatprep.subr.bf16.mxu0 0
  %955 = vmatpush1.bf16.msra.mxu0 %v927
  %956 = vmatprep.subr.bf16.mxu0 0
  %957 = vmatpush1.bf16.msra.mxu0 %v926
  %958 = vmatprep.subr.bf16.mxu0 0
  %959 = vmatpush2.bf16.msra.mxu0 0
  %960 = vmatprep.subr.bf16.mxu0 0
  %961 = vmatpush2.bf16.msra.mxu0 0
  %962 = vmatprep.subr.bf16.mxu0 0
  %963 = vmatpush2.bf16.msra.mxu0 0
  %964 = vmatprep.subr.bf16.mxu0 0
  %965 = vmatpush2.bf16.msra.mxu0 0
  %966 = vmatprep.subr.bf16.mxu0 0
  %967 = vmatpush2.bf16.msra.mxu0 0
  %968 = vmatprep.subr.bf16.mxu0 0
  %969 = vmatpush2.bf16.msra.mxu0 0
  %970 = vmatprep.subr.bf16.mxu0 0
  %971 = vmatpush2.bf16.msra.mxu0 0
  %972 = vmatprep.subr.bf16.mxu0 0
  %973 = vmatpush2.bf16.msra.mxu0 0
  %974 = vmatprep.mubr.bf16.mxu0 0
  %975 = vmatmul.mubr.bf16.gmra.mxu0 %v760
  %v976 = vpop.f32.mrf.mxu0
  %v977 = vadd.f32 %v880, %v976
  %v978 = vpop.f32.mrf.mxu0
  %v979 = vpop.f32.mrf.mxu0
  %v980 = vadd.f32 %v883, %v979
  %v981 = vpop.f32.mrf.mxu0
  %982 = vmatprep.mubr.bf16.mxu0 0
  %983 = vmatmul.mubr.bf16.gmra.mxu0 %v761
  %v984 = vpop.f32.mrf.mxu0
  %v985 = vadd.f32 %v888, %v984
  %v986 = vpop.f32.mrf.mxu0
  %v987 = vpop.f32.mrf.mxu0
  %v988 = vadd.f32 %v891, %v987
  %v989 = vpop.f32.mrf.mxu0
  %990 = vdwg.mxu0
  %v991 = vpack.c.bf16 %v757, %v756
  %v992 = vpack.c.bf16 %v759, %v758
  %s993 = scalar_lea.vmem %s3, 128
  %v994 = vld [vmem:[%s993] sm:$0xf]
  %v995 = vld [vmem:[%s993 + $0x4] sm:$0xf]
  %v996 = vld [vmem:[%s993 + $0x8] sm:$0xf]
  %v997 = vld [vmem:[%s993 + $0xc] sm:$0xf]
  %v998 = vld [vmem:[%s993 + $0x10] sm:$0xf]
  %v999 = vld [vmem:[%s993 + $0x14] sm:$0xf]
  %v1000 = vld [vmem:[%s993 + $0x18] sm:$0xf]
  %v1001 = vld [vmem:[%s993 + $0x1c] sm:$0xf]
  %v1002 = vld [vmem:[%s993 + $0x20] sm:$0xf]
  %v1003 = vld [vmem:[%s993 + $0x24] sm:$0xf]
  %v1004 = vld [vmem:[%s993 + $0x28] sm:$0xf]
  %v1005 = vld [vmem:[%s993 + $0x2c] sm:$0xf]
  %v1006 = vld [vmem:[%s993 + $0x30] sm:$0xf]
  %v1007 = vld [vmem:[%s993 + $0x34] sm:$0xf]
  %v1008 = vld [vmem:[%s993 + $0x38] sm:$0xf]
  %v1009 = vld [vmem:[%s993 + $0x3c] sm:$0xf]
  %v1026 = vunpack.c.l.b16 %v994
  %v1027 = vunpack.c.l.b16 %v995
  %v1028 = vunpack.c.l.b16 %v996
  %v1029 = vunpack.c.l.b16 %v997
  %v1030 = vunpack.c.l.b16 %v998
  %v1031 = vunpack.c.l.b16 %v999
  %v1032 = vunpack.c.l.b16 %v1000
  %v1033 = vunpack.c.l.b16 %v1001
  %v1034 = vunpack.c.l.b16 %v1002
  %v1035 = vunpack.c.l.b16 %v1003
  %v1036 = vunpack.c.l.b16 %v1004
  %v1037 = vunpack.c.l.b16 %v1005
  %v1038 = vunpack.c.l.b16 %v1006
  %v1039 = vunpack.c.l.b16 %v1007
  %v1040 = vunpack.c.l.b16 %v1008
  %v1041 = vunpack.c.l.b16 %v1009
  %v1042 = vpack.c.b16 %v1027, %v1026
  %v1043 = vpack.c.b16 %v1029, %v1028
  %v1044 = vpack.c.b16 %v1031, %v1030
  %v1045 = vpack.c.b16 %v1033, %v1032
  %v1046 = vpack.c.b16 %v1035, %v1034
  %v1047 = vpack.c.b16 %v1037, %v1036
  %v1048 = vpack.c.b16 %v1039, %v1038
  %v1049 = vpack.c.b16 %v1041, %v1040
  %1058 = vmatprep.subr.bf16.mxu0 0
  %1059 = vmatpush1.bf16.msra.mxu0 %v1049
  %1060 = vmatprep.subr.bf16.mxu0 0
  %1061 = vmatpush1.bf16.msra.mxu0 %v1048
  %1062 = vmatprep.subr.bf16.mxu0 0
  %1063 = vmatpush1.bf16.msra.mxu0 %v1047
  %1064 = vmatprep.subr.bf16.mxu0 0
  %1065 = vmatpush1.bf16.msra.mxu0 %v1046
  %1066 = vmatprep.subr.bf16.mxu0 0
  %1067 = vmatpush1.bf16.msra.mxu0 %v1045
  %1068 = vmatprep.subr.bf16.mxu0 0
  %1069 = vmatpush1.bf16.msra.mxu0 %v1044
  %1070 = vmatprep.subr.bf16.mxu0 0
  %1071 = vmatpush1.bf16.msra.mxu0 %v1043
  %1072 = vmatprep.subr.bf16.mxu0 0
  %1073 = vmatpush1.bf16.msra.mxu0 %v1042
  %1074 = vmatprep.subr.bf16.mxu0 0
  %1075 = vmatpush2.bf16.msra.mxu0 0
  %1076 = vmatprep.subr.bf16.mxu0 0
  %1077 = vmatpush2.bf16.msra.mxu0 0
  %1078 = vmatprep.subr.bf16.mxu0 0
  %1079 = vmatpush2.bf16.msra.mxu0 0
  %1080 = vmatprep.subr.bf16.mxu0 0
  %1081 = vmatpush2.bf16.msra.mxu0 0
  %1082 = vmatprep.subr.bf16.mxu0 0
  %1083 = vmatpush2.bf16.msra.mxu0 0
  %1084 = vmatprep.subr.bf16.mxu0 0
  %1085 = vmatpush2.bf16.msra.mxu0 0
  %1086 = vmatprep.subr.bf16.mxu0 0
  %1087 = vmatpush2.bf16.msra.mxu0 0
  %1088 = vmatprep.subr.bf16.mxu0 0
  %1089 = vmatpush2.bf16.msra.mxu0 0
  %1090 = vmatprep.mubr.bf16.mxu0 0
  %1091 = vmatmul.mubr.bf16.gmra.mxu0 %v991
  %v1092 = vpop.f32.mrf.mxu0
  %v1093 = vadd.f32 0.0, %v1092
  %v1094 = vpop.f32.mrf.mxu0
  %v1095 = vpop.f32.mrf.mxu0
  %v1096 = vadd.f32 0.0, %v1095
  %v1097 = vpop.f32.mrf.mxu0
  %1098 = vmatprep.mubr.bf16.mxu0 0
  %1099 = vmatmul.mubr.bf16.gmra.mxu0 %v992
  %v1100 = vpop.f32.mrf.mxu0
  %v1101 = vadd.f32 0.0, %v1100
  %v1102 = vpop.f32.mrf.mxu0
  %v1103 = vpop.f32.mrf.mxu0
  %v1104 = vadd.f32 0.0, %v1103
  %v1105 = vpop.f32.mrf.mxu0
  %1106 = vdwg.mxu0
  %v1107 = vadd.f32 %v977, %v1093
  %v1108 = vadd.f32 %v980, %v1096
  %v1109 = vadd.f32 %v985, %v1101
  %v1110 = vadd.f32 %v988, %v1104
  %v1111 = vld [vmem:[%s4 + $0x2] sm:$0x1]
  %v1112 = vld [vmem:[%s4 + $0x3] sm:$0x1]
  %v1113 = vadd.f32 %v1107, %v1108
  %v1114 = vadd.f32 %v1113, %v1109
  %v1115 = vadd.f32 %v1114, %v1110
  %v1116 = vrot.slane %v1115, 4
  %v1117 = vadd.f32 %v1115, %v1116
  %v1118 = vrot.slane %v1117, 2
  %v1119 = vadd.f32 %v1117, %v1118
  %v1120 = vrot.slane %v1119, 1
  %v1121 = vadd.f32 %v1119, %v1120
  %1122 = vmatprep.subr.mxu0 0.0
  %1123 = vmatpush1.msra.mxu0 %v42
  %1124 = vmatprep.subr.mxu0 0.0
  %1125 = vmatpush1.msra.mxu0 %v41
  %1126 = vmatprep.subr.mxu0 0.0
  %1127 = vmatpush1.msra.mxu0 %v40
  %1128 = vmatprep.subr.mxu0 0.0
  %1129 = vmatpush1.msra.mxu0 %v39
  %1130 = vmatprep.subr.mxu0 0.0
  %1131 = vmatpush1.msra.mxu0 %v38
  %1132 = vmatprep.subr.mxu0 0.0
  %1133 = vmatpush1.msra.mxu0 %v37
  %1134 = vmatprep.subr.mxu0 0.0
  %1135 = vmatpush1.msra.mxu0 %v36
  %1136 = vmatprep.subr.mxu0 0.0
  %1137 = vmatpush1.msra.mxu0 %v35
  %1138 = vmatprep.subr.mxu0 0.0
  %1139 = vmatpush1.msra.mxu0 %v34
  %1140 = vmatprep.subr.mxu0 0.0
  %1141 = vmatpush1.msra.mxu0 %v33
  %1142 = vmatprep.subr.mxu0 0.0
  %1143 = vmatpush1.msra.mxu0 %v32
  %1144 = vmatprep.subr.mxu0 0.0
  %1145 = vmatpush1.msra.mxu0 %v31
  %1146 = vmatprep.subr.mxu0 0.0
  %1147 = vmatpush1.msra.mxu0 %v30
  %1148 = vmatprep.subr.mxu0 0.0
  %1149 = vmatpush1.msra.mxu0 %v29
  %1150 = vmatprep.subr.mxu0 0.0
  %1151 = vmatpush1.msra.mxu0 %v28
  %1152 = vmatprep.subr.mxu0 0.0
  %1153 = vmatpush1.msra.mxu0 %v27
  %1154 = vmatprep.subr.mxu0 0.0
  %1155 = vmatpush2.msra.mxu0 0.0
  %1156 = vmatprep.subr.mxu0 0.0
  %1157 = vmatpush2.msra.mxu0 0.0
  %1158 = vmatprep.subr.mxu0 0.0
  %1159 = vmatpush2.msra.mxu0 0.0
  %1160 = vmatprep.subr.mxu0 0.0
  %1161 = vmatpush2.msra.mxu0 0.0
  %1162 = vmatprep.subr.mxu0 0.0
  %1163 = vmatpush2.msra.mxu0 0.0
  %1164 = vmatprep.subr.mxu0 0.0
  %1165 = vmatpush2.msra.mxu0 0.0
  %1166 = vmatprep.subr.mxu0 0.0
  %1167 = vmatpush2.msra.mxu0 0.0
  %1168 = vmatprep.subr.mxu0 0.0
  %1169 = vmatpush2.msra.mxu0 0.0
  %1170 = vmatprep.subr.mxu0 0.0
  %1171 = vmatpush2.msra.mxu0 0.0
  %1172 = vmatprep.subr.mxu0 0.0
  %1173 = vmatpush2.msra.mxu0 0.0
  %1174 = vmatprep.subr.mxu0 0.0
  %1175 = vmatpush2.msra.mxu0 0.0
  %1176 = vmatprep.subr.mxu0 0.0
  %1177 = vmatpush2.msra.mxu0 0.0
  %1178 = vmatprep.subr.mxu0 0.0
  %1179 = vmatpush2.msra.mxu0 0.0
  %1180 = vmatprep.subr.mxu0 0.0
  %1181 = vmatpush2.msra.mxu0 0.0
  %1182 = vmatprep.subr.mxu0 0.0
  %1183 = vmatpush2.msra.mxu0 0.0
  %1184 = vmatprep.subr.mxu0 0.0
  %1185 = vmatpush2.msra.mxu0 0.0
  %1186 = vmatprep.mubr.f32.mxu0 0.0
  %1187 = vmatmul.mubr.f32.gmra.mxu0 %v1121
  %v1188 = vpop.f32.mrf.mxu0
  %v1189 = vadd.f32 0.0, %v1188
  %v1190 = vpop.f32.mrf.mxu0
  %1191 = vdwg.mxu0
  %v1193 = vsel %vm471, %v1189, 0
  %1195 = vmatprep.subr.mxu0 0.0
  %1196 = vmatpush1.msra.mxu0 0.0
  %1197 = vmatprep.subr.mxu0 0.0
  %1198 = vmatpush1.msra.mxu0 0.0
  %1199 = vmatprep.subr.mxu0 0.0
  %1200 = vmatpush1.msra.mxu0 0.0
  %1201 = vmatprep.subr.mxu0 0.0
  %1202 = vmatpush1.msra.mxu0 0.0
  %1203 = vmatprep.subr.mxu0 0.0
  %1204 = vmatpush1.msra.mxu0 0.0
  %1205 = vmatprep.subr.mxu0 0.0
  %1206 = vmatpush1.msra.mxu0 0.0
  %1207 = vmatprep.subr.mxu0 0.0
  %1208 = vmatpush1.msra.mxu0 0.0
  %1209 = vmatprep.subr.mxu0 0.0
  %1210 = vmatpush1.msra.mxu0 0.0
  %1211 = vmatprep.subr.mxu0 0.0
  %1212 = vmatpush1.msra.mxu0 0.0
  %1213 = vmatprep.subr.mxu0 0.0
  %1214 = vmatpush1.msra.mxu0 0.0
  %1215 = vmatprep.subr.mxu0 0.0
  %1216 = vmatpush1.msra.mxu0 0.0
  %1217 = vmatprep.subr.mxu0 0.0
  %1218 = vmatpush1.msra.mxu0 0.0
  %1219 = vmatprep.subr.mxu0 0.0
  %1220 = vmatpush1.msra.mxu0 0.0
  %1221 = vmatprep.subr.mxu0 0.0
  %1222 = vmatpush1.msra.mxu0 0.0
  %1223 = vmatprep.subr.mxu0 0.0
  %1224 = vmatpush1.msra.mxu0 0.0
  %1225 = vmatprep.subr.mxu0 0.0
  %1226 = vmatpush1.msra.mxu0 %v43
  %1227 = vmatprep.subr.mxu0 0.0
  %1228 = vmatpush2.msra.mxu0 0.0
  %1229 = vmatprep.subr.mxu0 0.0
  %1230 = vmatpush2.msra.mxu0 0.0
  %1231 = vmatprep.subr.mxu0 0.0
  %1232 = vmatpush2.msra.mxu0 0.0
  %1233 = vmatprep.subr.mxu0 0.0
  %1234 = vmatpush2.msra.mxu0 0.0
  %1235 = vmatprep.subr.mxu0 0.0
  %1236 = vmatpush2.msra.mxu0 0.0
  %1237 = vmatprep.subr.mxu0 0.0
  %1238 = vmatpush2.msra.mxu0 0.0
  %1239 = vmatprep.subr.mxu0 0.0
  %1240 = vmatpush2.msra.mxu0 0.0
  %1241 = vmatprep.subr.mxu0 0.0
  %1242 = vmatpush2.msra.mxu0 0.0
  %1243 = vmatprep.subr.mxu0 0.0
  %1244 = vmatpush2.msra.mxu0 0.0
  %1245 = vmatprep.subr.mxu0 0.0
  %1246 = vmatpush2.msra.mxu0 0.0
  %1247 = vmatprep.subr.mxu0 0.0
  %1248 = vmatpush2.msra.mxu0 0.0
  %1249 = vmatprep.subr.mxu0 0.0
  %1250 = vmatpush2.msra.mxu0 0.0
  %1251 = vmatprep.subr.mxu0 0.0
  %1252 = vmatpush2.msra.mxu0 0.0
  %1253 = vmatprep.subr.mxu0 0.0
  %1254 = vmatpush2.msra.mxu0 0.0
  %1255 = vmatprep.subr.mxu0 0.0
  %1256 = vmatpush2.msra.mxu0 0.0
  %1257 = vmatprep.subr.mxu0 0.0
  %1258 = vmatpush2.msra.mxu0 0.0
  %1259 = vmatprep.mubr.f32.mxu0 0.0
  %1260 = vmatmul.mubr.f32.gmra.mxu0 %v1193
  %v1261 = vpop.f32.mrf.mxu0
  %v1262 = vadd.f32 0.0, %v1261
  %v1263 = vpop.f32.mrf.mxu0
  %1264 = vdwg.mxu0
  %v1265 = vlaneseq
  %v1266 = vshrl.u32 %v1265, 7
  %v1267 = vsub.s32 0, %v1266
  %v1268 = vrot.slane %v1262, %v1267
  %v1269 = vsub.f32 %v1107, %v1268
  %v1270 = vsub.f32 %v1108, %v1268
  %v1271 = vsub.f32 %v1109, %v1268
  %v1272 = vsub.f32 %v1110, %v1268
  %v1273 = vmul.f32 %v1269, %v1269
  %v1274 = vmul.f32 %v1270, %v1270
  %v1275 = vmul.f32 %v1271, %v1271
  %v1276 = vmul.f32 %v1272, %v1272
  %v1277 = vadd.f32 %v1273, %v1274
  %v1278 = vadd.f32 %v1277, %v1275
  %v1279 = vadd.f32 %v1278, %v1276
  %v1280 = vrot.slane %v1279, 4
  %v1281 = vadd.f32 %v1279, %v1280
  %v1282 = vrot.slane %v1281, 2
  %v1283 = vadd.f32 %v1281, %v1282
  %v1284 = vrot.slane %v1283, 1
  %v1285 = vadd.f32 %v1283, %v1284
  %1286 = vmatprep.subr.mxu0 0.0
  %1287 = vmatpush1.msra.mxu0 %v42
  %1288 = vmatprep.subr.mxu0 0.0
  %1289 = vmatpush1.msra.mxu0 %v41
  %1290 = vmatprep.subr.mxu0 0.0
  %1291 = vmatpush1.msra.mxu0 %v40
  %1292 = vmatprep.subr.mxu0 0.0
  %1293 = vmatpush1.msra.mxu0 %v39
  %1294 = vmatprep.subr.mxu0 0.0
  %1295 = vmatpush1.msra.mxu0 %v38
  %1296 = vmatprep.subr.mxu0 0.0
  %1297 = vmatpush1.msra.mxu0 %v37
  %1298 = vmatprep.subr.mxu0 0.0
  %1299 = vmatpush1.msra.mxu0 %v36
  %1300 = vmatprep.subr.mxu0 0.0
  %1301 = vmatpush1.msra.mxu0 %v35
  %1302 = vmatprep.subr.mxu0 0.0
  %1303 = vmatpush1.msra.mxu0 %v34
  %1304 = vmatprep.subr.mxu0 0.0
  %1305 = vmatpush1.msra.mxu0 %v33
  %1306 = vmatprep.subr.mxu0 0.0
  %1307 = vmatpush1.msra.mxu0 %v32
  %1308 = vmatprep.subr.mxu0 0.0
  %1309 = vmatpush1.msra.mxu0 %v31
  %1310 = vmatprep.subr.mxu0 0.0
  %1311 = vmatpush1.msra.mxu0 %v30
  %1312 = vmatprep.subr.mxu0 0.0
  %1313 = vmatpush1.msra.mxu0 %v29
  %1314 = vmatprep.subr.mxu0 0.0
  %1315 = vmatpush1.msra.mxu0 %v28
  %1316 = vmatprep.subr.mxu0 0.0
  %1317 = vmatpush1.msra.mxu0 %v27
  %1318 = vmatprep.subr.mxu0 0.0
  %1319 = vmatpush2.msra.mxu0 0.0
  %1320 = vmatprep.subr.mxu0 0.0
  %1321 = vmatpush2.msra.mxu0 0.0
  %1322 = vmatprep.subr.mxu0 0.0
  %1323 = vmatpush2.msra.mxu0 0.0
  %1324 = vmatprep.subr.mxu0 0.0
  %1325 = vmatpush2.msra.mxu0 0.0
  %1326 = vmatprep.subr.mxu0 0.0
  %1327 = vmatpush2.msra.mxu0 0.0
  %1328 = vmatprep.subr.mxu0 0.0
  %1329 = vmatpush2.msra.mxu0 0.0
  %1330 = vmatprep.subr.mxu0 0.0
  %1331 = vmatpush2.msra.mxu0 0.0
  %1332 = vmatprep.subr.mxu0 0.0
  %1333 = vmatpush2.msra.mxu0 0.0
  %1334 = vmatprep.subr.mxu0 0.0
  %1335 = vmatpush2.msra.mxu0 0.0
  %1336 = vmatprep.subr.mxu0 0.0
  %1337 = vmatpush2.msra.mxu0 0.0
  %1338 = vmatprep.subr.mxu0 0.0
  %1339 = vmatpush2.msra.mxu0 0.0
  %1340 = vmatprep.subr.mxu0 0.0
  %1341 = vmatpush2.msra.mxu0 0.0
  %1342 = vmatprep.subr.mxu0 0.0
  %1343 = vmatpush2.msra.mxu0 0.0
  %1344 = vmatprep.subr.mxu0 0.0
  %1345 = vmatpush2.msra.mxu0 0.0
  %1346 = vmatprep.subr.mxu0 0.0
  %1347 = vmatpush2.msra.mxu0 0.0
  %1348 = vmatprep.subr.mxu0 0.0
  %1349 = vmatpush2.msra.mxu0 0.0
  %1350 = vmatprep.mubr.f32.mxu0 0.0
  %1351 = vmatmul.mubr.f32.gmra.mxu0 %v1285
  %v1352 = vpop.f32.mrf.mxu0
  %v1353 = vadd.f32 1e-05, %v1352
  %v1354 = vpop.f32.mrf.mxu0
  %1355 = vdwg.mxu0
  %v1356 = vrsqrt.pop %v1353
  %v1357 = vmul.f32 %v1356, %v1111
  %v1359 = vrot.slane %v1112, 7
  %v1361 = vsel %vm641, %v1357, %v1359
  %v1363 = vsel %vm471, %v1361, 0
  %1365 = vmatprep.subr.mxu0 0.0
  %1366 = vmatpush1.msra.mxu0 0.0
  %1367 = vmatprep.subr.mxu0 0.0
  %1368 = vmatpush1.msra.mxu0 0.0
  %1369 = vmatprep.subr.mxu0 0.0
  %1370 = vmatpush1.msra.mxu0 0.0
  %1371 = vmatprep.subr.mxu0 0.0
  %1372 = vmatpush1.msra.mxu0 0.0
  %1373 = vmatprep.subr.mxu0 0.0
  %1374 = vmatpush1.msra.mxu0 0.0
  %1375 = vmatprep.subr.mxu0 0.0
  %1376 = vmatpush1.msra.mxu0 0.0
  %1377 = vmatprep.subr.mxu0 0.0
  %1378 = vmatpush1.msra.mxu0 0.0
  %1379 = vmatprep.subr.mxu0 0.0
  %1380 = vmatpush1.msra.mxu0 0.0
  %1381 = vmatprep.subr.mxu0 0.0
  %1382 = vmatpush1.msra.mxu0 0.0
  %1383 = vmatprep.subr.mxu0 0.0
  %1384 = vmatpush1.msra.mxu0 0.0
  %1385 = vmatprep.subr.mxu0 0.0
  %1386 = vmatpush1.msra.mxu0 0.0
  %1387 = vmatprep.subr.mxu0 0.0
  %1388 = vmatpush1.msra.mxu0 0.0
  %1389 = vmatprep.subr.mxu0 0.0
  %1390 = vmatpush1.msra.mxu0 0.0
  %1391 = vmatprep.subr.mxu0 0.0
  %1392 = vmatpush1.msra.mxu0 0.0
  %1393 = vmatprep.subr.mxu0 0.0
  %1394 = vmatpush1.msra.mxu0 0.0
  %1395 = vmatprep.subr.mxu0 0.0
  %1396 = vmatpush1.msra.mxu0 %v43
  %1397 = vmatprep.subr.mxu0 0.0
  %1398 = vmatpush2.msra.mxu0 0.0
  %1399 = vmatprep.subr.mxu0 0.0
  %1400 = vmatpush2.msra.mxu0 0.0
  %1401 = vmatprep.subr.mxu0 0.0
  %1402 = vmatpush2.msra.mxu0 0.0
  %1403 = vmatprep.subr.mxu0 0.0
  %1404 = vmatpush2.msra.mxu0 0.0
  %1405 = vmatprep.subr.mxu0 0.0
  %1406 = vmatpush2.msra.mxu0 0.0
  %1407 = vmatprep.subr.mxu0 0.0
  %1408 = vmatpush2.msra.mxu0 0.0
  %1409 = vmatprep.subr.mxu0 0.0
  %1410 = vmatpush2.msra.mxu0 0.0
  %1411 = vmatprep.subr.mxu0 0.0
  %1412 = vmatpush2.msra.mxu0 0.0
  %1413 = vmatprep.subr.mxu0 0.0
  %1414 = vmatpush2.msra.mxu0 0.0
  %1415 = vmatprep.subr.mxu0 0.0
  %1416 = vmatpush2.msra.mxu0 0.0
  %1417 = vmatprep.subr.mxu0 0.0
  %1418 = vmatpush2.msra.mxu0 0.0
  %1419 = vmatprep.subr.mxu0 0.0
  %1420 = vmatpush2.msra.mxu0 0.0
  %1421 = vmatprep.subr.mxu0 0.0
  %1422 = vmatpush2.msra.mxu0 0.0
  %1423 = vmatprep.subr.mxu0 0.0
  %1424 = vmatpush2.msra.mxu0 0.0
  %1425 = vmatprep.subr.mxu0 0.0
  %1426 = vmatpush2.msra.mxu0 0.0
  %1427 = vmatprep.subr.mxu0 0.0
  %1428 = vmatpush2.msra.mxu0 0.0
  %1429 = vmatprep.mubr.f32.mxu0 0.0
  %1430 = vmatmul.mubr.f32.gmra.mxu0 %v1363
  %v1431 = vpop.f32.mrf.mxu0
  %v1432 = vadd.f32 0.0, %v1431
  %v1433 = vpop.f32.mrf.mxu0
  %1434 = vdwg.mxu0
  %v1435 = vlaneseq
  %v1436 = vshrl.u32 %v1435, 7
  %v1437 = vsub.s32 0, %v1436
  %v1438 = vrot.slane %v1432, %v1437
  %v1439 = vmul.f32 %v1269, %v1438
  %v1440 = vmul.f32 %v1270, %v1438
  %v1441 = vmul.f32 %v1271, %v1438
  %v1442 = vmul.f32 %v1272, %v1438
  %v1443 = vlaneseq
  %v1444 = vshrl.u32 %v1443, 7
  %v1445 = vsub.s32 1, %v1444
  %v1446 = vrot.slane %v1432, %v1445
  %v1447 = vadd.f32 %v1439, %v1446
  %v1448 = vadd.f32 %v1440, %v1446
  %v1449 = vadd.f32 %v1441, %v1446
  %v1450 = vadd.f32 %v1442, %v1446
  %v1451 = vmax.f32 %v1447, 0.0
  %v1452 = vmax.f32 %v1448, 0.0
  %v1453 = vmax.f32 %v1449, 0.0
  %v1454 = vmax.f32 %v1450, 0.0
  %1455 = vst [vmem:[%s7] sm:$0xff] %v1451
  %1456 = vst [vmem:[%s7 + $0x8] sm:$0xff] %v1452
  %1457 = vst [vmem:[%s7 + $0x10] sm:$0xff] %v1453
  %1458 = vst [vmem:[%s7 + $0x18] sm:$0xff] %v1454
  // Predicated region
  $region30: #{conv_block_encoder.1} parent=0 // pred_check
    _
  $region31: #{conv_block_encoder.1} parent=0 // pred_check_branch
    %1460 = sbr.rel (0) target = $region33
  $region32: #{conv_block_encoder.1} parent=0 // pred_region
    _
  $region33: #{conv_block_encoder.1} parent=0 // pred_fallthru
    _
  // Predicated region
  $region34: #{conv_block_encoder.1} parent=0 // pred_check
    _
  $region35: #{conv_block_encoder.1} parent=0 // pred_check_branch
    %1462 = sbr.rel (0) target = $region37
  $region36: #{conv_block_encoder.1} parent=0 // pred_region
    _
  $region37: #{conv_block_encoder.1} parent=0 // pred_fallthru
    _

</llo_original>
